<compile_context>
chip_gen: v7x
topology: tpu7x:2x2x1
jax: 0.10.0
libtpu: 0.0.40
codegen_flags: <defaults>
</compile_context>

<pallas_src>
import jax
import jax.numpy as jnp
from jax.experimental import pallas as pl
from jax.experimental.pallas import tpu as pltpu

EMB = 460        # embedding_dim from the module
EMB_PAD = 512    # 460 padded up to a multiple of 128 lanes
NCLS = 5         # num_classes
OUT_PAD = 128    # lane-dense output width (wrapper slices [:, :NCLS])
EPS = 1e-5       # nn.LayerNorm default eps


def _layernorm(h, gamma, beta):
    """Standard LayerNorm over the last (unpadded) axis, in f32."""
    mu = jnp.mean(h, axis=-1, keepdims=True)
    var = jnp.mean((h - mu) ** 2, axis=-1, keepdims=True)
    return (h - mu) * jax.lax.rsqrt(var + EPS) * gamma + beta


def classifier_kernel(x_ref,
                      w_da_ref, b_da_ref, g_da_ref, be_da_ref,
                      w1_ref, b1_ref, g1_ref, be1_ref,
                      w2_ref, b2_ref, g2_ref, be2_ref,
                      w3_ref, b3_ref, g3_ref, be3_ref,
                      w4_ref, b4_ref,
                      o_ref):
    x = x_ref[...]                                          # (TB, 512) bf16

    # --- dimension_adapter: Linear -> LayerNorm(460) -> ReLU -----------------
    h = jnp.dot(x, w_da_ref[...], preferred_element_type=jnp.float32)
    h = h + b_da_ref[...]                                   # pad lanes exactly 0

    # LayerNorm over the 460 real lanes; pad lanes masked out of the stats.
    lane = jax.lax.broadcasted_iota(jnp.int32, (1, EMB_PAD), 1)
    feat_mask = (lane < EMB).astype(jnp.float32)            # (1, 512)
    mu = jnp.sum(h, axis=-1, keepdims=True) * (1.0 / EMB)
    centered = (h - mu) * feat_mask
    var = jnp.sum(centered * centered, axis=-1, keepdims=True) * (1.0 / EMB)
    h = centered * jax.lax.rsqrt(var + EPS) * g_da_ref[...] + be_da_ref[...]
    h = jnp.maximum(h, 0.0)                                 # pad lanes stay 0

    # --- attention branch intentionally omitted ------------------------------
    # softmax over dim=1 of a (B, 1) tensor is exactly 1.0 in f32, therefore
    # attended = h * 1.0 == h; wa1/ba1/wa2/ba2 cannot affect the output.

    # --- network (Dropout == identity in eval) -------------------------------
    z = jnp.dot(h.astype(jnp.bfloat16), w1_ref[...],
                preferred_element_type=jnp.float32) + b1_ref[...]
    z = jnp.maximum(_layernorm(z, g1_ref[...], be1_ref[...]), 0.0)

    z = jnp.dot(z.astype(jnp.bfloat16), w2_ref[...],
                preferred_element_type=jnp.float32) + b2_ref[...]
    z = jnp.maximum(_layernorm(z, g2_ref[...], be2_ref[...]), 0.0)

    z = jnp.dot(z.astype(jnp.bfloat16), w3_ref[...],
                preferred_element_type=jnp.float32) + b3_ref[...]
    z = jnp.maximum(_layernorm(z, g3_ref[...], be3_ref[...]), 0.0)

    logits = jnp.dot(z.astype(jnp.bfloat16), w4_ref[...],
                     preferred_element_type=jnp.float32) + b4_ref[...]   # (TB,128)

    # --- softmax over the 5 real classes, lane-dense 128-wide store ----------
    cls_lane = jax.lax.broadcasted_iota(jnp.int32, (1, OUT_PAD), 1)
    logits = jnp.where(cls_lane < NCLS, logits, -1e30)
    m = jnp.max(logits, axis=-1, keepdims=True)
    e = jnp.exp(logits - m)                                 # pad lanes -> 0
    denom = jnp.sum(e, axis=-1, keepdims=True)
    o_ref[...] = e * pl.reciprocal(denom, approx=True)


# ------------------------------- parameters ---------------------------------

def make_params(key, emb=EMB, ncls=NCLS):
    """Deterministic synthetic parameters; Linear weights stored (in, out), f32."""
    ks = iter(jax.random.split(key, 32))
    s = 0.05

    def w(i, o):
        return (s * jax.random.normal(next(ks), (i, o))).astype(jnp.float32)

    def b(o):
        return (0.02 * jax.random.normal(next(ks), (1, o))).astype(jnp.float32)

    def g(o):
        return (1.0 + 0.05 * jax.random.normal(next(ks), (1, o))).astype(jnp.float32)

    return dict(
        # dimension_adapter
        w_da=w(emb, emb), b_da=b(emb), g_da=g(emb), be_da=b(emb),
        # attention (kept only for the reference; provably a no-op, unused in kernel)
        wa1=w(emb, 128), ba1=b(128), wa2=w(1, 128), ba2=b(1),
        # network
        w1=w(emb, 256), b1=b(256), g1=g(256), be1=b(256),
        w2=w(256, 128), b2=b(128), g2=g(128), be2=b(128),
        w3=w(128, 64), b3=b(64), g3=g(64), be3=b(64),
        w4=w(64, ncls), b4=b(ncls),
    )


KERNEL_PARAM_ORDER = ("w_da", "b_da", "g_da", "be_da",
                      "w1", "b1", "g1", "be1",
                      "w2", "b2", "g2", "be2",
                      "w3", "b3", "g3", "be3",
                      "w4", "b4")


def _pad2(a, rows, cols):
    r, c = a.shape
    return jnp.pad(a, ((0, rows - r), (0, cols - c)))


def prepare_kernel_params(p):
    """Zero-pad 460 -> 512 (and 5 -> 128 for the head); weight matrices -> bf16,
    biases / LN affine params stay f32 (elementwise math runs in f32)."""
    bf16, f32 = jnp.bfloat16, jnp.float32
    return dict(
        w_da=_pad2(p["w_da"], EMB_PAD, EMB_PAD).astype(bf16),
        b_da=_pad2(p["b_da"], 1, EMB_PAD).astype(f32),
        g_da=_pad2(p["g_da"], 1, EMB_PAD).astype(f32),    # pad lanes: gamma = 0
        be_da=_pad2(p["be_da"], 1, EMB_PAD).astype(f32),  # pad lanes: beta = 0
        w1=_pad2(p["w1"], EMB_PAD, 256).astype(bf16),
        b1=p["b1"].astype(f32), g1=p["g1"].astype(f32), be1=p["be1"].astype(f32),
        w2=p["w2"].astype(bf16),
        b2=p["b2"].astype(f32), g2=p["g2"].astype(f32), be2=p["be2"].astype(f32),
        w3=p["w3"].astype(bf16),
        b3=p["b3"].astype(f32), g3=p["g3"].astype(f32), be3=p["be3"].astype(f32),
        w4=_pad2(p["w4"], 64, OUT_PAD).astype(bf16),
        b4=_pad2(p["b4"], 1, OUT_PAD).astype(f32),
    )


# --------------------------------- wrapper -----------------------------------

def _round_up(n, m):
    return ((n + m - 1) // m) * m


def enhanced_content_classifier(x, params, *, tile_b=512):
    """Pallas-backed forward pass. x: (B, 460) f32 -> (B, 5) softmax probs (f32)."""
    if x.ndim == 1:
        x = x[None, :]
    B = x.shape[0]
    assert x.shape[1] == EMB

    kp = prepare_kernel_params(params)

    # Batch tiling: up to `tile_b` rows per grid step are software-pipelined
    # through VMEM while the (<1 MiB bf16) weights stay resident (constant
    # index_map).  For best MXU utilization callers should batch requests so
    # each call sees >= 256 rows; at tiny B the call is launch/DMA bound.
    tb = min(tile_b, _round_up(B, 8))
    b_pad = _round_up(B, tb)
    x_p = jnp.pad(x, ((0, b_pad - B), (0, EMB_PAD - EMB))).astype(jnp.bfloat16)

    grid = (b_pad // tb,)
    const_spec = lambda a: pl.BlockSpec(a.shape, lambda i: (0, 0))
    in_specs = [pl.BlockSpec((tb, EMB_PAD), lambda i: (i, 0))]
    in_specs += [const_spec(kp[name]) for name in KERNEL_PARAM_ORDER]

    out = pl.pallas_call(
        classifier_kernel,
        out_shape=jax.ShapeDtypeStruct((b_pad, OUT_PAD), jnp.float32),
        grid=grid,
        in_specs=in_specs,
        out_specs=pl.BlockSpec((tb, OUT_PAD), lambda i: (i, 0)),
        compiler_params=pltpu.CompilerParams(
            dimension_semantics=("parallel",)),
    )(x_p, *[kp[name] for name in KERNEL_PARAM_ORDER])

    return out[:B, :NCLS]


# -------------------------------- reference ----------------------------------

def reference_forward(x, params):
    """Pure-JAX reference with the same bf16 rounding points as the kernel
    (weights / matmul inputs rounded to bf16, accumulation and elementwise math
    in f32).  Includes the attention branch to demonstrate it is a no-op."""
    bf = lambda a: a.astype(jnp.bfloat16).astype(jnp.float32)
    if x.ndim == 1:
        x = x[None, :]
    x = bf(x)
    h = x @ bf(params["w_da"]) + params["b_da"]
    h = _layernorm(h, params["g_da"], params["be_da"])
    h = jnp.maximum(h, 0.0)

    # attention: softmax over a size-1 axis is exactly 1.0
    a = jnp.tanh(bf(h) @ bf(params["wa1"]) + params["ba1"])
    att = jnp.sum(a * bf(params["wa2"]), axis=-1, keepdims=True) + params["ba2"]
    aw = jax.nn.softmax(att, axis=1)
    h = h * aw

    z = jnp.maximum(_layernorm(bf(h) @ bf(params["w1"]) + params["b1"],
                               params["g1"], params["be1"]), 0.0)
    z = jnp.maximum(_layernorm(bf(z) @ bf(params["w2"]) + params["b2"],
                               params["g2"], params["be2"]), 0.0)
    z = jnp.maximum(_layernorm(bf(z) @ bf(params["w3"]) + params["b3"],
                               params["g3"], params["be3"]), 0.0)
    logits = bf(z) @ bf(params["w4"]) + params["b4"]
    return jax.nn.softmax(logits, axis=1)


if __name__ == "__main__":
    key = jax.random.PRNGKey(0)
    k_x, k_p = jax.random.split(key)

    B = 8
    x = jax.random.normal(k_x, (B, EMB), dtype=jnp.float32)
    params = make_params(k_p)

    probs = jax.block_until_ready(enhanced_content_classifier(x, params))
    ref = jax.block_until_ready(reference_forward(x, params))

    assert probs.shape == (B, NCLS)
    # bf16 MXU inputs + approx-reciprocal softmax => compare with a tolerance
    # that covers the EUP approximation (still tight enough to catch any
    # structural / LayerNorm / padding error).
    assert jnp.allclose(jnp.sum(probs, axis=1), 1.0, atol=3e-3)
    assert jnp.allclose(probs, ref, atol=3e-3, rtol=3e-3)

    print("KERNEL_OK")
</pallas_src>

<mosaic_0001>
module attributes {stable_mosaic.version = 11 : i64} {
  func.func @classifier_kernel(%arg0: i32, %arg1: memref<8x512xbf16, #tpu.memory_space<vmem>>, %arg2: memref<512x512xbf16, #tpu.memory_space<vmem>>, %arg3: memref<1x512xf32, #tpu.memory_space<vmem>>, %arg4: memref<1x512xf32, #tpu.memory_space<vmem>>, %arg5: memref<1x512xf32, #tpu.memory_space<vmem>>, %arg6: memref<512x256xbf16, #tpu.memory_space<vmem>>, %arg7: memref<1x256xf32, #tpu.memory_space<vmem>>, %arg8: memref<1x256xf32, #tpu.memory_space<vmem>>, %arg9: memref<1x256xf32, #tpu.memory_space<vmem>>, %arg10: memref<256x128xbf16, #tpu.memory_space<vmem>>, %arg11: memref<1x128xf32, #tpu.memory_space<vmem>>, %arg12: memref<1x128xf32, #tpu.memory_space<vmem>>, %arg13: memref<1x128xf32, #tpu.memory_space<vmem>>, %arg14: memref<128x64xbf16, #tpu.memory_space<vmem>>, %arg15: memref<1x64xf32, #tpu.memory_space<vmem>>, %arg16: memref<1x64xf32, #tpu.memory_space<vmem>>, %arg17: memref<1x64xf32, #tpu.memory_space<vmem>>, %arg18: memref<64x128xbf16, #tpu.memory_space<vmem>>, %arg19: memref<1x128xf32, #tpu.memory_space<vmem>>, %arg20: memref<8x128xf32, #tpu.memory_space<vmem>>) attributes {dimension_semantics = [#tpu.dimension_semantics<parallel>], iteration_bounds = array<i64: 1>, scalar_prefetch = 0 : i64, scratch_operands = 0 : i64, tpu.core_type = #tpu.core_type<tc>, window_params = [{transform_indices = @transform_0, window_bounds = array<i64: 8, 512>}, {pipeline_mode = #tpu.pipeline_mode<synchronous>, transform_indices = @transform_1, window_bounds = array<i64: 512, 512>}, {pipeline_mode = #tpu.pipeline_mode<synchronous>, transform_indices = @transform_2, window_bounds = array<i64: 1, 512>}, {pipeline_mode = #tpu.pipeline_mode<synchronous>, transform_indices = @transform_3, window_bounds = array<i64: 1, 512>}, {pipeline_mode = #tpu.pipeline_mode<synchronous>, transform_indices = @transform_4, window_bounds = array<i64: 1, 512>}, {pipeline_mode = #tpu.pipeline_mode<synchronous>, transform_indices = @transform_5, window_bounds = array<i64: 512, 256>}, {pipeline_mode = #tpu.pipeline_mode<synchronous>, transform_indices = @transform_6, window_bounds = array<i64: 1, 256>}, {pipeline_mode = #tpu.pipeline_mode<synchronous>, transform_indices = @transform_7, window_bounds = array<i64: 1, 256>}, {pipeline_mode = #tpu.pipeline_mode<synchronous>, transform_indices = @transform_8, window_bounds = array<i64: 1, 256>}, {pipeline_mode = #tpu.pipeline_mode<synchronous>, transform_indices = @transform_9, window_bounds = array<i64: 256, 128>}, {pipeline_mode = #tpu.pipeline_mode<synchronous>, transform_indices = @transform_10, window_bounds = array<i64: 1, 128>}, {pipeline_mode = #tpu.pipeline_mode<synchronous>, transform_indices = @transform_11, window_bounds = array<i64: 1, 128>}, {pipeline_mode = #tpu.pipeline_mode<synchronous>, transform_indices = @transform_12, window_bounds = array<i64: 1, 128>}, {pipeline_mode = #tpu.pipeline_mode<synchronous>, transform_indices = @transform_13, window_bounds = array<i64: 128, 64>}, {pipeline_mode = #tpu.pipeline_mode<synchronous>, transform_indices = @transform_14, window_bounds = array<i64: 1, 64>}, {pipeline_mode = #tpu.pipeline_mode<synchronous>, transform_indices = @transform_15, window_bounds = array<i64: 1, 64>}, {pipeline_mode = #tpu.pipeline_mode<synchronous>, transform_indices = @transform_16, window_bounds = array<i64: 1, 64>}, {pipeline_mode = #tpu.pipeline_mode<synchronous>, transform_indices = @transform_17, window_bounds = array<i64: 64, 128>}, {pipeline_mode = #tpu.pipeline_mode<synchronous>, transform_indices = @transform_18, window_bounds = array<i64: 1, 128>}, {transform_indices = @transform_19, window_bounds = array<i64: 8, 128>}]} {
    %c0 = arith.constant 0 : index
    %c0_0 = arith.constant 0 : index
    %0 = vector.load %arg1[%c0, %c0_0] : memref<8x512xbf16, #tpu.memory_space<vmem>>, vector<8x512xbf16>
    %c0_1 = arith.constant 0 : index
    %c0_2 = arith.constant 0 : index
    %1 = vector.load %arg2[%c0_1, %c0_2] : memref<512x512xbf16, #tpu.memory_space<vmem>>, vector<512x512xbf16>
    %cst = arith.constant dense<0.000000e+00> : vector<8x512xf32>
    %2 = tpu.matmul %0, %1, %cst {dimension_numbers = #tpu.dot_dimension_numbers<[1], [0], [0], [1], [0, 0, 1, 1], [], []>} : vector<8x512xbf16>, vector<512x512xbf16>, vector<8x512xf32> -> vector<8x512xf32>
    %c0_3 = arith.constant 0 : index
    %c0_4 = arith.constant 0 : index
    %3 = vector.load %arg3[%c0_3, %c0_4] : memref<1x512xf32, #tpu.memory_space<vmem>>, vector<1x512xf32>
    %4 = vector.broadcast %3 : vector<1x512xf32> to vector<8x512xf32>
    %5 = arith.addf %2, %4 : vector<8x512xf32>
    %6 = tpu.iota {dimensions = array<i32: 1>} : vector<1x512xi32>
    %c460_i32 = arith.constant 460 : i32
    %7 = vector.broadcast %c460_i32 : i32 to vector<1x512xi32>
    %8 = arith.cmpi slt, %6, %7 : vector<1x512xi32>
    %9 = arith.extui %8 : vector<1x512xi1> to vector<1x512xi32>
    %10 = arith.sitofp %9 : vector<1x512xi32> to vector<1x512xf32>
    %cst_5 = arith.constant dense<0.000000e+00> : vector<8xf32>
    %11 = vector.multi_reduction <add>, %5, %cst_5 [1] : vector<8x512xf32> to vector<8xf32>
    %12 = vector.shape_cast %11 : vector<8xf32> to vector<8x1xf32>
    %cst_6 = arith.constant 0.00217391294 : f32
    %13 = vector.broadcast %cst_6 : f32 to vector<8x1xf32>
    %14 = arith.mulf %12, %13 : vector<8x1xf32>
    %15 = vector.broadcast %14 : vector<8x1xf32> to vector<8x512xf32>
    %16 = arith.subf %5, %15 : vector<8x512xf32>
    %17 = vector.broadcast %10 : vector<1x512xf32> to vector<8x512xf32>
    %18 = arith.mulf %16, %17 : vector<8x512xf32>
    %19 = arith.mulf %18, %18 : vector<8x512xf32>
    %cst_7 = arith.constant dense<0.000000e+00> : vector<8xf32>
    %20 = vector.multi_reduction <add>, %19, %cst_7 [1] : vector<8x512xf32> to vector<8xf32>
    %21 = vector.shape_cast %20 : vector<8xf32> to vector<8x1xf32>
    %cst_8 = arith.constant 0.00217391294 : f32
    %22 = vector.broadcast %cst_8 : f32 to vector<8x1xf32>
    %23 = arith.mulf %21, %22 : vector<8x1xf32>
    %cst_9 = arith.constant 9.99999974E-6 : f32
    %24 = vector.broadcast %cst_9 : f32 to vector<8x1xf32>
    %25 = arith.addf %23, %24 : vector<8x1xf32>
    %26 = math.rsqrt %25 : vector<8x1xf32>
    %27 = vector.broadcast %26 : vector<8x1xf32> to vector<8x512xf32>
    %28 = arith.mulf %18, %27 : vector<8x512xf32>
    %c0_10 = arith.constant 0 : index
    %c0_11 = arith.constant 0 : index
    %29 = vector.load %arg4[%c0_10, %c0_11] : memref<1x512xf32, #tpu.memory_space<vmem>>, vector<1x512xf32>
    %30 = vector.broadcast %29 : vector<1x512xf32> to vector<8x512xf32>
    %31 = arith.mulf %28, %30 : vector<8x512xf32>
    %c0_12 = arith.constant 0 : index
    %c0_13 = arith.constant 0 : index
    %32 = vector.load %arg5[%c0_12, %c0_13] : memref<1x512xf32, #tpu.memory_space<vmem>>, vector<1x512xf32>
    %33 = vector.broadcast %32 : vector<1x512xf32> to vector<8x512xf32>
    %34 = arith.addf %31, %33 : vector<8x512xf32>
    %cst_14 = arith.constant 0.000000e+00 : f32
    %35 = vector.broadcast %cst_14 : f32 to vector<8x512xf32>
    %36 = arith.maximumf %34, %35 : vector<8x512xf32>
    %37 = arith.truncf %36 : vector<8x512xf32> to vector<8x512xbf16>
    %c0_15 = arith.constant 0 : index
    %c0_16 = arith.constant 0 : index
    %38 = vector.load %arg6[%c0_15, %c0_16] : memref<512x256xbf16, #tpu.memory_space<vmem>>, vector<512x256xbf16>
    %cst_17 = arith.constant dense<0.000000e+00> : vector<8x256xf32>
    %39 = tpu.matmul %37, %38, %cst_17 {dimension_numbers = #tpu.dot_dimension_numbers<[1], [0], [0], [1], [0, 0, 1, 1], [], []>} : vector<8x512xbf16>, vector<512x256xbf16>, vector<8x256xf32> -> vector<8x256xf32>
    %c0_18 = arith.constant 0 : index
    %c0_19 = arith.constant 0 : index
    %40 = vector.load %arg7[%c0_18, %c0_19] : memref<1x256xf32, #tpu.memory_space<vmem>>, vector<1x256xf32>
    %41 = vector.broadcast %40 : vector<1x256xf32> to vector<8x256xf32>
    %42 = arith.addf %39, %41 : vector<8x256xf32>
    %c0_20 = arith.constant 0 : index
    %c0_21 = arith.constant 0 : index
    %43 = vector.load %arg8[%c0_20, %c0_21] : memref<1x256xf32, #tpu.memory_space<vmem>>, vector<1x256xf32>
    %c0_22 = arith.constant 0 : index
    %c0_23 = arith.constant 0 : index
    %44 = vector.load %arg9[%c0_22, %c0_23] : memref<1x256xf32, #tpu.memory_space<vmem>>, vector<1x256xf32>
    %cst_24 = arith.constant dense<0.000000e+00> : vector<8xf32>
    %45 = vector.multi_reduction <add>, %42, %cst_24 [1] : vector<8x256xf32> to vector<8xf32>
    %46 = vector.shape_cast %45 : vector<8xf32> to vector<8x1xf32>
    %cst_25 = arith.constant 2.560000e+02 : f32
    %47 = vector.broadcast %cst_25 : f32 to vector<8x1xf32>
    %48 = arith.divf %46, %47 : vector<8x1xf32>
    %49 = vector.broadcast %48 : vector<8x1xf32> to vector<8x256xf32>
    %50 = arith.subf %42, %49 : vector<8x256xf32>
    %51 = arith.mulf %50, %50 : vector<8x256xf32>
    %cst_26 = arith.constant dense<0.000000e+00> : vector<8xf32>
    %52 = vector.multi_reduction <add>, %51, %cst_26 [1] : vector<8x256xf32> to vector<8xf32>
    %53 = vector.shape_cast %52 : vector<8xf32> to vector<8x1xf32>
    %cst_27 = arith.constant 2.560000e+02 : f32
    %54 = vector.broadcast %cst_27 : f32 to vector<8x1xf32>
    %55 = arith.divf %53, %54 : vector<8x1xf32>
    %56 = vector.broadcast %48 : vector<8x1xf32> to vector<8x256xf32>
    %57 = arith.subf %42, %56 : vector<8x256xf32>
    %cst_28 = arith.constant 9.99999974E-6 : f32
    %58 = vector.broadcast %cst_28 : f32 to vector<8x1xf32>
    %59 = arith.addf %55, %58 : vector<8x1xf32>
    %60 = math.rsqrt %59 : vector<8x1xf32>
    %61 = vector.broadcast %60 : vector<8x1xf32> to vector<8x256xf32>
    %62 = arith.mulf %57, %61 : vector<8x256xf32>
    %63 = vector.broadcast %43 : vector<1x256xf32> to vector<8x256xf32>
    %64 = arith.mulf %62, %63 : vector<8x256xf32>
    %65 = vector.broadcast %44 : vector<1x256xf32> to vector<8x256xf32>
    %66 = arith.addf %64, %65 : vector<8x256xf32>
    %cst_29 = arith.constant 0.000000e+00 : f32
    %67 = vector.broadcast %cst_29 : f32 to vector<8x256xf32>
    %68 = arith.maximumf %66, %67 : vector<8x256xf32>
    %69 = arith.truncf %68 : vector<8x256xf32> to vector<8x256xbf16>
    %c0_30 = arith.constant 0 : index
    %c0_31 = arith.constant 0 : index
    %70 = vector.load %arg10[%c0_30, %c0_31] : memref<256x128xbf16, #tpu.memory_space<vmem>>, vector<256x128xbf16>
    %cst_32 = arith.constant dense<0.000000e+00> : vector<8x128xf32>
    %71 = tpu.matmul %69, %70, %cst_32 {dimension_numbers = #tpu.dot_dimension_numbers<[1], [0], [0], [1], [0, 0, 1, 1], [], []>} : vector<8x256xbf16>, vector<256x128xbf16>, vector<8x128xf32> -> vector<8x128xf32>
    %c0_33 = arith.constant 0 : index
    %c0_34 = arith.constant 0 : index
    %72 = vector.load %arg11[%c0_33, %c0_34] : memref<1x128xf32, #tpu.memory_space<vmem>>, vector<1x128xf32>
    %73 = vector.broadcast %72 : vector<1x128xf32> to vector<8x128xf32>
    %74 = arith.addf %71, %73 : vector<8x128xf32>
    %c0_35 = arith.constant 0 : index
    %c0_36 = arith.constant 0 : index
    %75 = vector.load %arg12[%c0_35, %c0_36] : memref<1x128xf32, #tpu.memory_space<vmem>>, vector<1x128xf32>
    %c0_37 = arith.constant 0 : index
    %c0_38 = arith.constant 0 : index
    %76 = vector.load %arg13[%c0_37, %c0_38] : memref<1x128xf32, #tpu.memory_space<vmem>>, vector<1x128xf32>
    %cst_39 = arith.constant dense<0.000000e+00> : vector<8xf32>
    %77 = vector.multi_reduction <add>, %74, %cst_39 [1] : vector<8x128xf32> to vector<8xf32>
    %78 = vector.shape_cast %77 : vector<8xf32> to vector<8x1xf32>
    %cst_40 = arith.constant 1.280000e+02 : f32
    %79 = vector.broadcast %cst_40 : f32 to vector<8x1xf32>
    %80 = arith.divf %78, %79 : vector<8x1xf32>
    %81 = vector.broadcast %80 : vector<8x1xf32> to vector<8x128xf32>
    %82 = arith.subf %74, %81 : vector<8x128xf32>
    %83 = arith.mulf %82, %82 : vector<8x128xf32>
    %cst_41 = arith.constant dense<0.000000e+00> : vector<8xf32>
    %84 = vector.multi_reduction <add>, %83, %cst_41 [1] : vector<8x128xf32> to vector<8xf32>
    %85 = vector.shape_cast %84 : vector<8xf32> to vector<8x1xf32>
    %cst_42 = arith.constant 1.280000e+02 : f32
    %86 = vector.broadcast %cst_42 : f32 to vector<8x1xf32>
    %87 = arith.divf %85, %86 : vector<8x1xf32>
    %88 = vector.broadcast %80 : vector<8x1xf32> to vector<8x128xf32>
    %89 = arith.subf %74, %88 : vector<8x128xf32>
    %cst_43 = arith.constant 9.99999974E-6 : f32
    %90 = vector.broadcast %cst_43 : f32 to vector<8x1xf32>
    %91 = arith.addf %87, %90 : vector<8x1xf32>
    %92 = math.rsqrt %91 : vector<8x1xf32>
    %93 = vector.broadcast %92 : vector<8x1xf32> to vector<8x128xf32>
    %94 = arith.mulf %89, %93 : vector<8x128xf32>
    %95 = vector.broadcast %75 : vector<1x128xf32> to vector<8x128xf32>
    %96 = arith.mulf %94, %95 : vector<8x128xf32>
    %97 = vector.broadcast %76 : vector<1x128xf32> to vector<8x128xf32>
    %98 = arith.addf %96, %97 : vector<8x128xf32>
    %cst_44 = arith.constant 0.000000e+00 : f32
    %99 = vector.broadcast %cst_44 : f32 to vector<8x128xf32>
    %100 = arith.maximumf %98, %99 : vector<8x128xf32>
    %101 = arith.truncf %100 : vector<8x128xf32> to vector<8x128xbf16>
    %c0_45 = arith.constant 0 : index
    %c0_46 = arith.constant 0 : index
    %102 = vector.load %arg14[%c0_45, %c0_46] : memref<128x64xbf16, #tpu.memory_space<vmem>>, vector<128x64xbf16>
    %cst_47 = arith.constant dense<0.000000e+00> : vector<8x64xf32>
    %103 = tpu.matmul %101, %102, %cst_47 {dimension_numbers = #tpu.dot_dimension_numbers<[1], [0], [0], [1], [0, 0, 1, 1], [], []>} : vector<8x128xbf16>, vector<128x64xbf16>, vector<8x64xf32> -> vector<8x64xf32>
    %c0_48 = arith.constant 0 : index
    %c0_49 = arith.constant 0 : index
    %104 = vector.load %arg15[%c0_48, %c0_49] : memref<1x64xf32, #tpu.memory_space<vmem>>, vector<1x64xf32>
    %105 = vector.broadcast %104 : vector<1x64xf32> to vector<8x64xf32>
    %106 = arith.addf %103, %105 : vector<8x64xf32>
    %c0_50 = arith.constant 0 : index
    %c0_51 = arith.constant 0 : index
    %107 = vector.load %arg16[%c0_50, %c0_51] : memref<1x64xf32, #tpu.memory_space<vmem>>, vector<1x64xf32>
    %c0_52 = arith.constant 0 : index
    %c0_53 = arith.constant 0 : index
    %108 = vector.load %arg17[%c0_52, %c0_53] : memref<1x64xf32, #tpu.memory_space<vmem>>, vector<1x64xf32>
    %cst_54 = arith.constant dense<0.000000e+00> : vector<8xf32>
    %109 = vector.multi_reduction <add>, %106, %cst_54 [1] : vector<8x64xf32> to vector<8xf32>
    %110 = vector.shape_cast %109 : vector<8xf32> to vector<8x1xf32>
    %cst_55 = arith.constant 6.400000e+01 : f32
    %111 = vector.broadcast %cst_55 : f32 to vector<8x1xf32>
    %112 = arith.divf %110, %111 : vector<8x1xf32>
    %113 = vector.broadcast %112 : vector<8x1xf32> to vector<8x64xf32>
    %114 = arith.subf %106, %113 : vector<8x64xf32>
    %115 = arith.mulf %114, %114 : vector<8x64xf32>
    %cst_56 = arith.constant dense<0.000000e+00> : vector<8xf32>
    %116 = vector.multi_reduction <add>, %115, %cst_56 [1] : vector<8x64xf32> to vector<8xf32>
    %117 = vector.shape_cast %116 : vector<8xf32> to vector<8x1xf32>
    %cst_57 = arith.constant 6.400000e+01 : f32
    %118 = vector.broadcast %cst_57 : f32 to vector<8x1xf32>
    %119 = arith.divf %117, %118 : vector<8x1xf32>
    %120 = vector.broadcast %112 : vector<8x1xf32> to vector<8x64xf32>
    %121 = arith.subf %106, %120 : vector<8x64xf32>
    %cst_58 = arith.constant 9.99999974E-6 : f32
    %122 = vector.broadcast %cst_58 : f32 to vector<8x1xf32>
    %123 = arith.addf %119, %122 : vector<8x1xf32>
    %124 = math.rsqrt %123 : vector<8x1xf32>
    %125 = vector.broadcast %124 : vector<8x1xf32> to vector<8x64xf32>
    %126 = arith.mulf %121, %125 : vector<8x64xf32>
    %127 = vector.broadcast %107 : vector<1x64xf32> to vector<8x64xf32>
    %128 = arith.mulf %126, %127 : vector<8x64xf32>
    %129 = vector.broadcast %108 : vector<1x64xf32> to vector<8x64xf32>
    %130 = arith.addf %128, %129 : vector<8x64xf32>
    %cst_59 = arith.constant 0.000000e+00 : f32
    %131 = vector.broadcast %cst_59 : f32 to vector<8x64xf32>
    %132 = arith.maximumf %130, %131 : vector<8x64xf32>
    %133 = arith.truncf %132 : vector<8x64xf32> to vector<8x64xbf16>
    %c0_60 = arith.constant 0 : index
    %c0_61 = arith.constant 0 : index
    %134 = vector.load %arg18[%c0_60, %c0_61] : memref<64x128xbf16, #tpu.memory_space<vmem>>, vector<64x128xbf16>
    %cst_62 = arith.constant dense<0.000000e+00> : vector<8x128xf32>
    %135 = tpu.matmul %133, %134, %cst_62 {dimension_numbers = #tpu.dot_dimension_numbers<[1], [0], [0], [1], [0, 0, 1, 1], [], []>} : vector<8x64xbf16>, vector<64x128xbf16>, vector<8x128xf32> -> vector<8x128xf32>
    %c0_63 = arith.constant 0 : index
    %c0_64 = arith.constant 0 : index
    %136 = vector.load %arg19[%c0_63, %c0_64] : memref<1x128xf32, #tpu.memory_space<vmem>>, vector<1x128xf32>
    %137 = vector.broadcast %136 : vector<1x128xf32> to vector<8x128xf32>
    %138 = arith.addf %135, %137 : vector<8x128xf32>
    %139 = tpu.iota {dimensions = array<i32: 1>} : vector<1x128xi32>
    %c5_i32 = arith.constant 5 : i32
    %140 = vector.broadcast %c5_i32 : i32 to vector<1x128xi32>
    %141 = arith.cmpi slt, %139, %140 : vector<1x128xi32>
    %cst_65 = arith.constant -1.000000e+30 : f32
    %142 = vector.shape_cast %141 : vector<1x128xi1> to vector<1x128xi1>
    %143 = vector.broadcast %142 : vector<1x128xi1> to vector<8x128xi1>
    %144 = vector.broadcast %cst_65 : f32 to vector<8x128xf32>
    %145 = arith.select %143, %138, %144 : vector<8x128xi1>, vector<8x128xf32>
    %cst_66 = arith.constant dense<0xFF800000> : vector<8xf32>
    %146 = vector.multi_reduction <maximumf>, %145, %cst_66 [1] : vector<8x128xf32> to vector<8xf32>
    %147 = vector.shape_cast %146 : vector<8xf32> to vector<8x1xf32>
    %148 = vector.broadcast %147 : vector<8x1xf32> to vector<8x128xf32>
    %149 = arith.subf %145, %148 : vector<8x128xf32>
    %150 = math.exp %149 : vector<8x128xf32>
    %cst_67 = arith.constant dense<0.000000e+00> : vector<8xf32>
    %151 = vector.multi_reduction <add>, %150, %cst_67 [1] : vector<8x128xf32> to vector<8xf32>
    %152 = vector.shape_cast %151 : vector<8xf32> to vector<8x1xf32>
    %153 = tpu.reciprocal %152 {approx = true} : vector<8x1xf32> -> vector<8x1xf32>
    %154 = vector.broadcast %153 : vector<8x1xf32> to vector<8x128xf32>
    %155 = arith.mulf %150, %154 : vector<8x128xf32>
    %c0_68 = arith.constant 0 : index
    %c0_69 = arith.constant 0 : index
    %156 = vector.load %arg20[%c0_68, %c0_69] : memref<8x128xf32, #tpu.memory_space<vmem>>, vector<8x128xf32>
    tpu.vector_store %arg20[%c0_68, %c0_69], %155 {strides = array<i32>} : memref<8x128xf32, #tpu.memory_space<vmem>>, vector<8x128xf32>,
    return
  }
  func.func @transform_0(%arg0: i32) -> (i32, i32) {
    %c0_i32 = arith.constant 0 : i32
    %c0_i32_0 = arith.constant 0 : i32
    return %arg0, %c0_i32 : i32, i32
  }
  func.func @transform_1(%arg0: i32) -> (i32, i32) {
    %c0_i32 = arith.constant 0 : i32
    %c0_i32_0 = arith.constant 0 : i32
    %c0_i32_1 = arith.constant 0 : i32
    return %c0_i32, %c0_i32_0 : i32, i32
  }
  func.func @transform_2(%arg0: i32) -> (i32, i32) {
    %c0_i32 = arith.constant 0 : i32
    %c0_i32_0 = arith.constant 0 : i32
    %c0_i32_1 = arith.constant 0 : i32
    return %c0_i32, %c0_i32_0 : i32, i32
  }
  func.func @transform_3(%arg0: i32) -> (i32, i32) {
    %c0_i32 = arith.constant 0 : i32
    %c0_i32_0 = arith.constant 0 : i32
    %c0_i32_1 = arith.constant 0 : i32
    return %c0_i32, %c0_i32_0 : i32, i32
  }
  func.func @transform_4(%arg0: i32) -> (i32, i32) {
    %c0_i32 = arith.constant 0 : i32
    %c0_i32_0 = arith.constant 0 : i32
    %c0_i32_1 = arith.constant 0 : i32
    return %c0_i32, %c0_i32_0 : i32, i32
  }
  func.func @transform_5(%arg0: i32) -> (i32, i32) {
    %c0_i32 = arith.constant 0 : i32
    %c0_i32_0 = arith.constant 0 : i32
    %c0_i32_1 = arith.constant 0 : i32
    return %c0_i32, %c0_i32_0 : i32, i32
  }
  func.func @transform_6(%arg0: i32) -> (i32, i32) {
    %c0_i32 = arith.constant 0 : i32
    %c0_i32_0 = arith.constant 0 : i32
    %c0_i32_1 = arith.constant 0 : i32
    return %c0_i32, %c0_i32_0 : i32, i32
  }
  func.func @transform_7(%arg0: i32) -> (i32, i32) {
    %c0_i32 = arith.constant 0 : i32
    %c0_i32_0 = arith.constant 0 : i32
    %c0_i32_1 = arith.constant 0 : i32
    return %c0_i32, %c0_i32_0 : i32, i32
  }
  func.func @transform_8(%arg0: i32) -> (i32, i32) {
    %c0_i32 = arith.constant 0 : i32
    %c0_i32_0 = arith.constant 0 : i32
    %c0_i32_1 = arith.constant 0 : i32
    return %c0_i32, %c0_i32_0 : i32, i32
  }
  func.func @transform_9(%arg0: i32) -> (i32, i32) {
    %c0_i32 = arith.constant 0 : i32
    %c0_i32_0 = arith.constant 0 : i32
    %c0_i32_1 = arith.constant 0 : i32
    return %c0_i32, %c0_i32_0 : i32, i32
  }
  func.func @transform_10(%arg0: i32) -> (i32, i32) {
    %c0_i32 = arith.constant 0 : i32
    %c0_i32_0 = arith.constant 0 : i32
    %c0_i32_1 = arith.constant 0 : i32
    return %c0_i32, %c0_i32_0 : i32, i32
  }
  func.func @transform_11(%arg0: i32) -> (i32, i32) {
    %c0_i32 = arith.constant 0 : i32
    %c0_i32_0 = arith.constant 0 : i32
    %c0_i32_1 = arith.constant 0 : i32
    return %c0_i32, %c0_i32_0 : i32, i32
  }
  func.func @transform_12(%arg0: i32) -> (i32, i32) {
    %c0_i32 = arith.constant 0 : i32
    %c0_i32_0 = arith.constant 0 : i32
    %c0_i32_1 = arith.constant 0 : i32
    return %c0_i32, %c0_i32_0 : i32, i32
  }
  func.func @transform_13(%arg0: i32) -> (i32, i32) {
    %c0_i32 = arith.constant 0 : i32
    %c0_i32_0 = arith.constant 0 : i32
    %c0_i32_1 = arith.constant 0 : i32
    return %c0_i32, %c0_i32_0 : i32, i32
  }
  func.func @transform_14(%arg0: i32) -> (i32, i32) {
    %c0_i32 = arith.constant 0 : i32
    %c0_i32_0 = arith.constant 0 : i32
    %c0_i32_1 = arith.constant 0 : i32
    return %c0_i32, %c0_i32_0 : i32, i32
  }
  func.func @transform_15(%arg0: i32) -> (i32, i32) {
    %c0_i32 = arith.constant 0 : i32
    %c0_i32_0 = arith.constant 0 : i32
    %c0_i32_1 = arith.constant 0 : i32
    return %c0_i32, %c0_i32_0 : i32, i32
  }
  func.func @transform_16(%arg0: i32) -> (i32, i32) {
    %c0_i32 = arith.constant 0 : i32
    %c0_i32_0 = arith.constant 0 : i32
    %c0_i32_1 = arith.constant 0 : i32
    return %c0_i32, %c0_i32_0 : i32, i32
  }
  func.func @transform_17(%arg0: i32) -> (i32, i32) {
    %c0_i32 = arith.constant 0 : i32
    %c0_i32_0 = arith.constant 0 : i32
    %c0_i32_1 = arith.constant 0 : i32
    return %c0_i32, %c0_i32_0 : i32, i32
  }
  func.func @transform_18(%arg0: i32) -> (i32, i32) {
    %c0_i32 = arith.constant 0 : i32
    %c0_i32_0 = arith.constant 0 : i32
    %c0_i32_1 = arith.constant 0 : i32
    return %c0_i32, %c0_i32_0 : i32, i32
  }
  func.func @transform_19(%arg0: i32) -> (i32, i32) {
    %c0_i32 = arith.constant 0 : i32
    %c0_i32_0 = arith.constant 0 : i32
    return %arg0, %c0_i32 : i32, i32
  }
}

</mosaic_0001>

<llo_original>
// kernel: tpu_custom_call.1
$region0: #{tpu_custom_call.1}
  #allocation0 [shape = 'u32[]', space=smem, size = 0x4, offset = 0x4, fixed_abs, tag = 'smem constant byte address 0x4 - core index']
  #allocation1 [shape = 'u32[144,128]{1,0:T(1,128)}', space=vmem, size = 0x12000, scoped, tag = 'internal scratch']
  %s0 = inlined_call_operand.hbm [shape: bf16[8,512], index: 0, kind: input, shape index: {}]
  %s1 = inlined_call_operand.hbm [shape: bf16[512,512], index: 1, kind: input, shape index: {}]
  %s2 = inlined_call_operand.hbm [shape: f32[1,512], index: 2, kind: input, shape index: {}]
  %s3 = inlined_call_operand.hbm [shape: f32[1,512], index: 3, kind: input, shape index: {}]
  %s4 = inlined_call_operand.hbm [shape: f32[1,512], index: 4, kind: input, shape index: {}]
  %s5 = inlined_call_operand.hbm [shape: bf16[512,256], index: 5, kind: input, shape index: {}]
  %s6 = inlined_call_operand.hbm [shape: f32[1,256], index: 6, kind: input, shape index: {}]
  %s7 = inlined_call_operand.hbm [shape: f32[1,256], index: 7, kind: input, shape index: {}]
  %s8 = inlined_call_operand.hbm [shape: f32[1,256], index: 8, kind: input, shape index: {}]
  %s9 = inlined_call_operand.vmem [shape: bf16[256,128], index: 9, kind: input, shape index: {}]
  %s10 = inlined_call_operand.hbm [shape: f32[1,128], index: 10, kind: input, shape index: {}]
  %s11 = inlined_call_operand.hbm [shape: f32[1,128], index: 11, kind: input, shape index: {}]
  %s12 = inlined_call_operand.hbm [shape: f32[1,128], index: 12, kind: input, shape index: {}]
  %s13 = inlined_call_operand.vmem [shape: bf16[128,64], index: 13, kind: input, shape index: {}]
  %s14 = inlined_call_operand.hbm [shape: f32[1,64], index: 14, kind: input, shape index: {}]
  %s15 = inlined_call_operand.hbm [shape: f32[1,64], index: 15, kind: input, shape index: {}]
  %s16 = inlined_call_operand.hbm [shape: f32[1,64], index: 16, kind: input, shape index: {}]
  %s17 = inlined_call_operand.vmem [shape: bf16[64,128], index: 17, kind: input, shape index: {}]
  %s18 = inlined_call_operand.vmem [shape: f32[1,128], index: 18, kind: input, shape index: {}]
  %s19 = inlined_call_operand.hbm [shape: f32[8,128], index: 19, kind: output, shape index: {}]
  %s20 = sld [smem:[#allocation0]]
  $region146: #{tpu_custom_call.1} parent=0
    _
  %s22 = ssub.s32 1, %s20
  %s23 = scalar_select 0, %s22, %s20
  $region1: #{tpu_custom_call.1} parent=0
    #allocation2 [shape = 'u8[8192]{0}', space=vmem, size = 0x2000, scoped, tag = 'input window, operand 0, single buffered']
    #allocation3 [shape = 's32[1]{0}', space=sflag, size = 0x4, scoped, tag = 'scoped memory for tpu_custom_call.1']
    #allocation4 [shape = 's32[1]{0}', space=sflag, size = 0x4, scoped, tag = 'scoped memory for tpu_custom_call.1']
    #allocation5 [shape = 'u8[524288]{0}', space=vmem, size = 0x80000, scoped, tag = 'input window, operand 1, single buffered']
    #allocation6 [shape = 's32[1]{0}', space=sflag, size = 0x4, scoped, tag = 'scoped memory for tpu_custom_call.1']
    #allocation7 [shape = 'u8[2048]{0}', space=vmem, size = 0x800, scoped, tag = 'input window, operand 2, single buffered']
    #allocation8 [shape = 'u8[2048]{0}', space=vmem, size = 0x800, scoped, tag = 'input window, operand 3, single buffered']
    #allocation9 [shape = 's32[1]{0}', space=sflag, size = 0x4, scoped, tag = 'scoped memory for tpu_custom_call.1']
    #allocation10 [shape = 'u8[2048]{0}', space=vmem, size = 0x800, scoped, tag = 'input window, operand 4, single buffered']
    #allocation11 [shape = 'u8[262144]{0}', space=vmem, size = 0x40000, scoped, tag = 'input window, operand 5, single buffered']
    #allocation12 [shape = 's32[1]{0}', space=sflag, size = 0x4, scoped, tag = 'scoped memory for tpu_custom_call.1']
    #allocation13 [shape = 'u8[1024]{0}', space=vmem, size = 0x400, scoped, tag = 'input window, operand 6, single buffered']
    #allocation14 [shape = 'u8[1024]{0}', space=vmem, size = 0x400, scoped, tag = 'input window, operand 7, single buffered']
    #allocation15 [shape = 's32[1]{0}', space=sflag, size = 0x4, scoped, tag = 'scoped memory for tpu_custom_call.1']
    #allocation16 [shape = 'u8[1024]{0}', space=vmem, size = 0x400, scoped, tag = 'input window, operand 8, single buffered']
    #allocation17 [shape = 'u8[512]{0}', space=vmem, size = 0x400, scoped, tag = 'input window, operand 10, single buffered']
    #allocation18 [shape = 's32[1]{0}', space=sflag, size = 0x4, scoped, tag = 'scoped memory for tpu_custom_call.1']
    #allocation19 [shape = 'u8[512]{0}', space=vmem, size = 0x400, scoped, tag = 'input window, operand 11, single buffered']
    #allocation20 [shape = 'u8[512]{0}', space=vmem, size = 0x400, scoped, tag = 'input window, operand 12, single buffered']
    #allocation21 [shape = 's32[1]{0}', space=sflag, size = 0x4, scoped, tag = 'scoped memory for tpu_custom_call.1']
    #allocation22 [shape = 'u8[512]{0}', space=vmem, size = 0x400, scoped, tag = 'input window, operand 14, single buffered']
    #allocation23 [shape = 'u8[512]{0}', space=vmem, size = 0x400, scoped, tag = 'input window, operand 15, single buffered']
    #allocation24 [shape = 's32[1]{0}', space=sflag, size = 0x4, scoped, tag = 'scoped memory for tpu_custom_call.1']
    #allocation25 [shape = 'u8[512]{0}', space=vmem, size = 0x400, scoped, tag = 'input window, operand 16, single buffered']
    #allocation26 [shape = 'u8[4096]{0}', space=vmem, size = 0x1000, scoped, tag = 'output window, operand 0, single buffered']
    %24 = vsyncpa [#allocation3], 0
    %25 = vsyncpa [#allocation6], 0
    %26 = vsyncpa [#allocation9], 0
    %27 = vsyncpa [#allocation12], 0
    %28 = vsyncpa [#allocation15], 0
    %29 = vsyncpa [#allocation18], 0
    %30 = vsyncpa [#allocation21], 0
    %31 = vsyncpa [#allocation24], 0
    %32 = vsyncpa [#allocation4], 0
    // Predicated region
    $region2: #{tpu_custom_call.1} parent=1 // pred_check
      _
    $region3: #{tpu_custom_call.1} parent=1 // pred_check_branch
      %34 = sbr.rel (0) target = $region5
    $region4: #{tpu_custom_call.1} parent=1 // pred_region
      %s36 = ssub.s32 256, 256
      %37 = vsyncadd [#allocation3], %s36
      %s39 = sshll.u32 [#allocation2], 4
      %s40 = int_to_ptr.vmem [resolvable:$true] %s39
      %42 = dma.hbm_to_vmem [thread:$0]  %s0, 256, %s40, [#allocation3]
    $region5: #{tpu_custom_call.1} parent=1 // pred_fallthru
      _
    // Predicated region
    $region6: #{tpu_custom_call.1} parent=1 // pred_check
      _
    $region7: #{tpu_custom_call.1} parent=1 // pred_check_branch
      %44 = sbr.rel (0) target = $region9
    $region8: #{tpu_custom_call.1} parent=1 // pred_region
      %s46 = ssub.s32 16384, 16384
      %47 = vsyncadd [#allocation6], %s46
      %s48 = sshll.u32 [#allocation5], 4
      %s49 = int_to_ptr.vmem [resolvable:$true] %s48
      %54 = dma.hbm_to_vmem [thread:$0]  %s1, 16384, %s49, [#allocation6], 256, 256, 16
    $region9: #{tpu_custom_call.1} parent=1 // pred_fallthru
      _
    // Predicated region
    $region10: #{tpu_custom_call.1} parent=1 // pred_check
      _
    $region11: #{tpu_custom_call.1} parent=1 // pred_check_branch
      %56 = sbr.rel (0) target = $region13
    $region12: #{tpu_custom_call.1} parent=1 // pred_region
      %s58 = ssub.s32 64, 64
      %59 = vsyncadd [#allocation6], %s58
      %s61 = sshll.u32 [#allocation7], 4
      %s62 = int_to_ptr.vmem [resolvable:$true] %s61
      %64 = dma.hbm_to_vmem [thread:$0]  %s2, 64, %s62, [#allocation6]
    $region13: #{tpu_custom_call.1} parent=1 // pred_fallthru
      _
    // Predicated region
    $region14: #{tpu_custom_call.1} parent=1 // pred_check
      _
    $region15: #{tpu_custom_call.1} parent=1 // pred_check_branch
      %66 = sbr.rel (0) target = $region17
    $region16: #{tpu_custom_call.1} parent=1 // pred_region
      %s68 = ssub.s32 64, 64
      %69 = vsyncadd [#allocation9], %s68
      %s71 = sshll.u32 [#allocation8], 4
      %s72 = int_to_ptr.vmem [resolvable:$true] %s71
      %74 = dma.hbm_to_vmem [thread:$0]  %s3, 64, %s72, [#allocation9]
    $region17: #{tpu_custom_call.1} parent=1 // pred_fallthru
      _
    // Predicated region
    $region18: #{tpu_custom_call.1} parent=1 // pred_check
      _
    $region19: #{tpu_custom_call.1} parent=1 // pred_check_branch
      %76 = sbr.rel (0) target = $region21
    $region20: #{tpu_custom_call.1} parent=1 // pred_region
      %s78 = ssub.s32 64, 64
      %79 = vsyncadd [#allocation9], %s78
      %s81 = sshll.u32 [#allocation10], 4
      %s82 = int_to_ptr.vmem [resolvable:$true] %s81
      %84 = dma.hbm_to_vmem [thread:$0]  %s4, 64, %s82, [#allocation9]
    $region21: #{tpu_custom_call.1} parent=1 // pred_fallthru
      _
    // Predicated region
    $region22: #{tpu_custom_call.1} parent=1 // pred_check
      _
    $region23: #{tpu_custom_call.1} parent=1 // pred_check_branch
      %86 = sbr.rel (0) target = $region25
    $region24: #{tpu_custom_call.1} parent=1 // pred_region
      %s88 = ssub.s32 8192, 8192
      %89 = vsyncadd [#allocation12], %s88
      %s90 = sshll.u32 [#allocation11], 4
      %s91 = int_to_ptr.vmem [resolvable:$true] %s90
      %96 = dma.hbm_to_vmem [thread:$0]  %s5, 8192, %s91, [#allocation12], 128, 128, 8
    $region25: #{tpu_custom_call.1} parent=1 // pred_fallthru
      _
    // Predicated region
    $region26: #{tpu_custom_call.1} parent=1 // pred_check
      _
    $region27: #{tpu_custom_call.1} parent=1 // pred_check_branch
      %98 = sbr.rel (0) target = $region29
    $region28: #{tpu_custom_call.1} parent=1 // pred_region
      %s100 = ssub.s32 32, 32
      %101 = vsyncadd [#allocation12], %s100
      %s103 = sshll.u32 [#allocation13], 4
      %s104 = int_to_ptr.vmem [resolvable:$true] %s103
      %106 = dma.hbm_to_vmem [thread:$0]  %s6, 32, %s104, [#allocation12]
    $region29: #{tpu_custom_call.1} parent=1 // pred_fallthru
      _
    // Predicated region
    $region30: #{tpu_custom_call.1} parent=1 // pred_check
      _
    $region31: #{tpu_custom_call.1} parent=1 // pred_check_branch
      %108 = sbr.rel (0) target = $region33
    $region32: #{tpu_custom_call.1} parent=1 // pred_region
      %s110 = ssub.s32 32, 32
      %111 = vsyncadd [#allocation15], %s110
      %s113 = sshll.u32 [#allocation14], 4
      %s114 = int_to_ptr.vmem [resolvable:$true] %s113
      %116 = dma.hbm_to_vmem [thread:$0]  %s7, 32, %s114, [#allocation15]
    $region33: #{tpu_custom_call.1} parent=1 // pred_fallthru
      _
    // Predicated region
    $region34: #{tpu_custom_call.1} parent=1 // pred_check
      _
    $region35: #{tpu_custom_call.1} parent=1 // pred_check_branch
      %118 = sbr.rel (0) target = $region37
    $region36: #{tpu_custom_call.1} parent=1 // pred_region
      %s120 = ssub.s32 32, 32
      %121 = vsyncadd [#allocation15], %s120
      %s123 = sshll.u32 [#allocation16], 4
      %s124 = int_to_ptr.vmem [resolvable:$true] %s123
      %126 = dma.hbm_to_vmem [thread:$0]  %s8, 32, %s124, [#allocation15]
    $region37: #{tpu_custom_call.1} parent=1 // pred_fallthru
      _
    // Predicated region
    $region38: #{tpu_custom_call.1} parent=1 // pred_check
      _
    $region39: #{tpu_custom_call.1} parent=1 // pred_check_branch
      %128 = sbr.rel (0) target = $region41
    $region40: #{tpu_custom_call.1} parent=1 // pred_region
      _
    $region41: #{tpu_custom_call.1} parent=1 // pred_fallthru
      _
    // Predicated region
    $region42: #{tpu_custom_call.1} parent=1 // pred_check
      _
    $region43: #{tpu_custom_call.1} parent=1 // pred_check_branch
      %130 = sbr.rel (0) target = $region45
    $region44: #{tpu_custom_call.1} parent=1 // pred_region
      %s132 = ssub.s32 16, 16
      %133 = vsyncadd [#allocation18], %s132
      %s135 = sshll.u32 [#allocation17], 4
      %s136 = int_to_ptr.vmem [resolvable:$true] %s135
      %138 = dma.hbm_to_vmem [thread:$0]  %s10, 16, %s136, [#allocation18]
    $region45: #{tpu_custom_call.1} parent=1 // pred_fallthru
      _
    // Predicated region
    $region46: #{tpu_custom_call.1} parent=1 // pred_check
      _
    $region47: #{tpu_custom_call.1} parent=1 // pred_check_branch
      %140 = sbr.rel (0) target = $region49
    $region48: #{tpu_custom_call.1} parent=1 // pred_region
      %s142 = ssub.s32 16, 16
      %143 = vsyncadd [#allocation18], %s142
      %s145 = sshll.u32 [#allocation19], 4
      %s146 = int_to_ptr.vmem [resolvable:$true] %s145
      %148 = dma.hbm_to_vmem [thread:$0]  %s11, 16, %s146, [#allocation18]
    $region49: #{tpu_custom_call.1} parent=1 // pred_fallthru
      _
    // Predicated region
    $region50: #{tpu_custom_call.1} parent=1 // pred_check
      _
    $region51: #{tpu_custom_call.1} parent=1 // pred_check_branch
      %150 = sbr.rel (0) target = $region53
    $region52: #{tpu_custom_call.1} parent=1 // pred_region
      %s152 = ssub.s32 16, 16
      %153 = vsyncadd [#allocation21], %s152
      %s155 = sshll.u32 [#allocation20], 4
      %s156 = int_to_ptr.vmem [resolvable:$true] %s155
      %158 = dma.hbm_to_vmem [thread:$0]  %s12, 16, %s156, [#allocation21]
    $region53: #{tpu_custom_call.1} parent=1 // pred_fallthru
      _
    // Predicated region
    $region54: #{tpu_custom_call.1} parent=1 // pred_check
      _
    $region55: #{tpu_custom_call.1} parent=1 // pred_check_branch
      %160 = sbr.rel (0) target = $region57
    $region56: #{tpu_custom_call.1} parent=1 // pred_region
      _
    $region57: #{tpu_custom_call.1} parent=1 // pred_fallthru
      _
    // Predicated region
    $region58: #{tpu_custom_call.1} parent=1 // pred_check
      _
    $region59: #{tpu_custom_call.1} parent=1 // pred_check_branch
      %162 = sbr.rel (0) target = $region61
    $region60: #{tpu_custom_call.1} parent=1 // pred_region
      %s164 = ssub.s32 16, 16
      %165 = vsyncadd [#allocation21], %s164
      %s167 = sshll.u32 [#allocation22], 4
      %s168 = int_to_ptr.vmem [resolvable:$true] %s167
      %170 = dma.hbm_to_vmem [thread:$0]  %s14, 16, %s168, [#allocation21]
    $region61: #{tpu_custom_call.1} parent=1 // pred_fallthru
      _
    // Predicated region
    $region62: #{tpu_custom_call.1} parent=1 // pred_check
      _
    $region63: #{tpu_custom_call.1} parent=1 // pred_check_branch
      %172 = sbr.rel (0) target = $region65
    $region64: #{tpu_custom_call.1} parent=1 // pred_region
      %s174 = ssub.s32 16, 16
      %175 = vsyncadd [#allocation24], %s174
      %s177 = sshll.u32 [#allocation23], 4
      %s178 = int_to_ptr.vmem [resolvable:$true] %s177
      %180 = dma.hbm_to_vmem [thread:$0]  %s15, 16, %s178, [#allocation24]
    $region65: #{tpu_custom_call.1} parent=1 // pred_fallthru
      _
    // Predicated region
    $region66: #{tpu_custom_call.1} parent=1 // pred_check
      _
    $region67: #{tpu_custom_call.1} parent=1 // pred_check_branch
      %182 = sbr.rel (0) target = $region69
    $region68: #{tpu_custom_call.1} parent=1 // pred_region
      %s184 = ssub.s32 16, 16
      %185 = vsyncadd [#allocation24], %s184
      %s187 = sshll.u32 [#allocation25], 4
      %s188 = int_to_ptr.vmem [resolvable:$true] %s187
      %190 = dma.hbm_to_vmem [thread:$0]  %s16, 16, %s188, [#allocation24]
    $region69: #{tpu_custom_call.1} parent=1 // pred_fallthru
      _
    // Predicated region
    $region70: #{tpu_custom_call.1} parent=1 // pred_check
      _
    $region71: #{tpu_custom_call.1} parent=1 // pred_check_branch
      %192 = sbr.rel (0) target = $region73
    $region72: #{tpu_custom_call.1} parent=1 // pred_region
      _
    $region73: #{tpu_custom_call.1} parent=1 // pred_fallthru
      _
    // Predicated region
    $region74: #{tpu_custom_call.1} parent=1 // pred_check
      _
    $region75: #{tpu_custom_call.1} parent=1 // pred_check_branch
      %194 = sbr.rel (0) target = $region77
    $region76: #{tpu_custom_call.1} parent=1 // pred_region
      _
    $region77: #{tpu_custom_call.1} parent=1 // pred_fallthru
      _
    // Predicated region
    $region78: #{tpu_custom_call.1} parent=1 // pred_check
      _
    $region79: #{tpu_custom_call.1} parent=1 // pred_check_branch
      %196 = sbr.rel (0) target = $region81
    $region80: #{tpu_custom_call.1} parent=1 // pred_region
      %197 = dma.done [#allocation3], 256
    $region81: #{tpu_custom_call.1} parent=1 // pred_fallthru
      _
    // Predicated region
    $region82: #{tpu_custom_call.1} parent=1 // pred_check
      _
    $region83: #{tpu_custom_call.1} parent=1 // pred_check_branch
      %199 = sbr.rel (0) target = $region85
    $region84: #{tpu_custom_call.1} parent=1 // pred_region
      %200 = dma.done [#allocation6], 16384
    $region85: #{tpu_custom_call.1} parent=1 // pred_fallthru
      _
    // Predicated region
    $region86: #{tpu_custom_call.1} parent=1 // pred_check
      _
    $region87: #{tpu_custom_call.1} parent=1 // pred_check_branch
      %202 = sbr.rel (0) target = $region89
    $region88: #{tpu_custom_call.1} parent=1 // pred_region
      %203 = dma.done [#allocation6], 64
    $region89: #{tpu_custom_call.1} parent=1 // pred_fallthru
      _
    // Predicated region
    $region90: #{tpu_custom_call.1} parent=1 // pred_check
      _
    $region91: #{tpu_custom_call.1} parent=1 // pred_check_branch
      %205 = sbr.rel (0) target = $region93
    $region92: #{tpu_custom_call.1} parent=1 // pred_region
      %206 = dma.done [#allocation9], 64
    $region93: #{tpu_custom_call.1} parent=1 // pred_fallthru
      _
    // Predicated region
    $region94: #{tpu_custom_call.1} parent=1 // pred_check
      _
    $region95: #{tpu_custom_call.1} parent=1 // pred_check_branch
      %208 = sbr.rel (0) target = $region97
    $region96: #{tpu_custom_call.1} parent=1 // pred_region
      %209 = dma.done [#allocation9], 64
    $region97: #{tpu_custom_call.1} parent=1 // pred_fallthru
      _
    // Predicated region
    $region98: #{tpu_custom_call.1} parent=1 // pred_check
      _
    $region99: #{tpu_custom_call.1} parent=1 // pred_check_branch
      %211 = sbr.rel (0) target = $region101
    $region100: #{tpu_custom_call.1} parent=1 // pred_region
      %212 = dma.done [#allocation12], 8192
    $region101: #{tpu_custom_call.1} parent=1 // pred_fallthru
      _
    // Predicated region
    $region102: #{tpu_custom_call.1} parent=1 // pred_check
      _
    $region103: #{tpu_custom_call.1} parent=1 // pred_check_branch
      %214 = sbr.rel (0) target = $region105
    $region104: #{tpu_custom_call.1} parent=1 // pred_region
      %215 = dma.done [#allocation12], 32
    $region105: #{tpu_custom_call.1} parent=1 // pred_fallthru
      _
    // Predicated region
    $region106: #{tpu_custom_call.1} parent=1 // pred_check
      _
    $region107: #{tpu_custom_call.1} parent=1 // pred_check_branch
      %217 = sbr.rel (0) target = $region109
    $region108: #{tpu_custom_call.1} parent=1 // pred_region
      %218 = dma.done [#allocation15], 32
    $region109: #{tpu_custom_call.1} parent=1 // pred_fallthru
      _
    // Predicated region
    $region110: #{tpu_custom_call.1} parent=1 // pred_check
      _
    $region111: #{tpu_custom_call.1} parent=1 // pred_check_branch
      %220 = sbr.rel (0) target = $region113
    $region112: #{tpu_custom_call.1} parent=1 // pred_region
      %221 = dma.done [#allocation15], 32
    $region113: #{tpu_custom_call.1} parent=1 // pred_fallthru
      _
    // Predicated region
    $region114: #{tpu_custom_call.1} parent=1 // pred_check
      _
    $region115: #{tpu_custom_call.1} parent=1 // pred_check_branch
      %223 = sbr.rel (0) target = $region117
    $region116: #{tpu_custom_call.1} parent=1 // pred_region
      %224 = dma.done [#allocation18], 16
    $region117: #{tpu_custom_call.1} parent=1 // pred_fallthru
      _
    // Predicated region
    $region118: #{tpu_custom_call.1} parent=1 // pred_check
      _
    $region119: #{tpu_custom_call.1} parent=1 // pred_check_branch
      %226 = sbr.rel (0) target = $region121
    $region120: #{tpu_custom_call.1} parent=1 // pred_region
      %227 = dma.done [#allocation18], 16
    $region121: #{tpu_custom_call.1} parent=1 // pred_fallthru
      _
    // Predicated region
    $region122: #{tpu_custom_call.1} parent=1 // pred_check
      _
    $region123: #{tpu_custom_call.1} parent=1 // pred_check_branch
      %229 = sbr.rel (0) target = $region125
    $region124: #{tpu_custom_call.1} parent=1 // pred_region
      %230 = dma.done [#allocation21], 16
    $region125: #{tpu_custom_call.1} parent=1 // pred_fallthru
      _
    // Predicated region
    $region126: #{tpu_custom_call.1} parent=1 // pred_check
      _
    $region127: #{tpu_custom_call.1} parent=1 // pred_check_branch
      %232 = sbr.rel (0) target = $region129
    $region128: #{tpu_custom_call.1} parent=1 // pred_region
      %233 = dma.done [#allocation21], 16
    $region129: #{tpu_custom_call.1} parent=1 // pred_fallthru
      _
    // Predicated region
    $region130: #{tpu_custom_call.1} parent=1 // pred_check
      _
    $region131: #{tpu_custom_call.1} parent=1 // pred_check_branch
      %235 = sbr.rel (0) target = $region133
    $region132: #{tpu_custom_call.1} parent=1 // pred_region
      %236 = dma.done [#allocation24], 16
    $region133: #{tpu_custom_call.1} parent=1 // pred_fallthru
      _
    // Predicated region
    $region134: #{tpu_custom_call.1} parent=1 // pred_check
      _
    $region135: #{tpu_custom_call.1} parent=1 // pred_check_branch
      %238 = sbr.rel (0) target = $region137
    $region136: #{tpu_custom_call.1} parent=1 // pred_region
      %239 = dma.done [#allocation24], 16
    $region137: #{tpu_custom_call.1} parent=1 // pred_fallthru
      _
    %v241 = vld [vmem:[#allocation2] sm:$0xff]
    %v242 = vld [vmem:[#allocation2 + $0x8] sm:$0xff]
    %v243 = vld [vmem:[#allocation5] sm:$0xff]
    %v244 = vld [vmem:[#allocation5 + $0x8] sm:$0xff]
    %v245 = vld [vmem:[#allocation5 + $0x10] sm:$0xff]
    %v246 = vld [vmem:[#allocation5 + $0x18] sm:$0xff]
    %v247 = vld [vmem:[#allocation5 + $0x20] sm:$0xff]
    %v248 = vld [vmem:[#allocation5 + $0x28] sm:$0xff]
    %v249 = vld [vmem:[#allocation5 + $0x30] sm:$0xff]
    %v250 = vld [vmem:[#allocation5 + $0x38] sm:$0xff]
    %v251 = vld [vmem:[#allocation5 + $0x40] sm:$0xff]
    %v252 = vld [vmem:[#allocation5 + $0x48] sm:$0xff]
    %v253 = vld [vmem:[#allocation5 + $0x50] sm:$0xff]
    %v254 = vld [vmem:[#allocation5 + $0x58] sm:$0xff]
    %v255 = vld [vmem:[#allocation5 + $0x60] sm:$0xff]
    %v256 = vld [vmem:[#allocation5 + $0x68] sm:$0xff]
    %v257 = vld [vmem:[#allocation5 + $0x70] sm:$0xff]
    %v258 = vld [vmem:[#allocation5 + $0x78] sm:$0xff]
    %v259 = vld [vmem:[#allocation5 + $0x80] sm:$0xff]
    %v260 = vld [vmem:[#allocation5 + $0x88] sm:$0xff]
    %v261 = vld [vmem:[#allocation5 + $0x90] sm:$0xff]
    %v262 = vld [vmem:[#allocation5 + $0x98] sm:$0xff]
    %v263 = vld [vmem:[#allocation5 + $0xa0] sm:$0xff]
    %v264 = vld [vmem:[#allocation5 + $0xa8] sm:$0xff]
    %v265 = vld [vmem:[#allocation5 + $0xb0] sm:$0xff]
    %v266 = vld [vmem:[#allocation5 + $0xb8] sm:$0xff]
    %v267 = vld [vmem:[#allocation5 + $0xc0] sm:$0xff]
    %v268 = vld [vmem:[#allocation5 + $0xc8] sm:$0xff]
    %v269 = vld [vmem:[#allocation5 + $0xd0] sm:$0xff]
    %v270 = vld [vmem:[#allocation5 + $0xd8] sm:$0xff]
    %v271 = vld [vmem:[#allocation5 + $0xe0] sm:$0xff]
    %v272 = vld [vmem:[#allocation5 + $0xe8] sm:$0xff]
    %v273 = vld [vmem:[#allocation5 + $0xf0] sm:$0xff]
    %v274 = vld [vmem:[#allocation5 + $0xf8] sm:$0xff]
    %v275 = vld [vmem:[#allocation5 + $0x100] sm:$0xff]
    %v276 = vld [vmem:[#allocation5 + $0x108] sm:$0xff]
    %v277 = vld [vmem:[#allocation5 + $0x110] sm:$0xff]
    %v278 = vld [vmem:[#allocation5 + $0x118] sm:$0xff]
    %v279 = vld [vmem:[#allocation5 + $0x120] sm:$0xff]
    %v280 = vld [vmem:[#allocation5 + $0x128] sm:$0xff]
    %v281 = vld [vmem:[#allocation5 + $0x130] sm:$0xff]
    %v282 = vld [vmem:[#allocation5 + $0x138] sm:$0xff]
    %v283 = vld [vmem:[#allocation5 + $0x140] sm:$0xff]
    %v284 = vld [vmem:[#allocation5 + $0x148] sm:$0xff]
    %v285 = vld [vmem:[#allocation5 + $0x150] sm:$0xff]
    %v286 = vld [vmem:[#allocation5 + $0x158] sm:$0xff]
    %v287 = vld [vmem:[#allocation5 + $0x160] sm:$0xff]
    %v288 = vld [vmem:[#allocation5 + $0x168] sm:$0xff]
    %v289 = vld [vmem:[#allocation5 + $0x170] sm:$0xff]
    %v290 = vld [vmem:[#allocation5 + $0x178] sm:$0xff]
    %v291 = vld [vmem:[#allocation5 + $0x180] sm:$0xff]
    %v292 = vld [vmem:[#allocation5 + $0x188] sm:$0xff]
    %v293 = vld [vmem:[#allocation5 + $0x190] sm:$0xff]
    %v294 = vld [vmem:[#allocation5 + $0x198] sm:$0xff]
    %v295 = vld [vmem:[#allocation5 + $0x1a0] sm:$0xff]
    %v296 = vld [vmem:[#allocation5 + $0x1a8] sm:$0xff]
    %v297 = vld [vmem:[#allocation5 + $0x1b0] sm:$0xff]
    %v298 = vld [vmem:[#allocation5 + $0x1b8] sm:$0xff]
    %v299 = vld [vmem:[#allocation5 + $0x1c0] sm:$0xff]
    %v300 = vld [vmem:[#allocation5 + $0x1c8] sm:$0xff]
    %v301 = vld [vmem:[#allocation5 + $0x1d0] sm:$0xff]
    %v302 = vld [vmem:[#allocation5 + $0x1d8] sm:$0xff]
    %v303 = vld [vmem:[#allocation5 + $0x1e0] sm:$0xff]
    %v304 = vld [vmem:[#allocation5 + $0x1e8] sm:$0xff]
    %v305 = vld [vmem:[#allocation5 + $0x1f0] sm:$0xff]
    %v306 = vld [vmem:[#allocation5 + $0x1f8] sm:$0xff]
    %v307 = vld [vmem:[#allocation5 + $0x200] sm:$0xff]
    %v308 = vld [vmem:[#allocation5 + $0x208] sm:$0xff]
    %v309 = vld [vmem:[#allocation5 + $0x210] sm:$0xff]
    %v310 = vld [vmem:[#allocation5 + $0x218] sm:$0xff]
    %v311 = vld [vmem:[#allocation5 + $0x220] sm:$0xff]
    %v312 = vld [vmem:[#allocation5 + $0x228] sm:$0xff]
    %v313 = vld [vmem:[#allocation5 + $0x230] sm:$0xff]
    %v314 = vld [vmem:[#allocation5 + $0x238] sm:$0xff]
    %v315 = vld [vmem:[#allocation5 + $0x240] sm:$0xff]
    %v316 = vld [vmem:[#allocation5 + $0x248] sm:$0xff]
    %v317 = vld [vmem:[#allocation5 + $0x250] sm:$0xff]
    %v318 = vld [vmem:[#allocation5 + $0x258] sm:$0xff]
    %v319 = vld [vmem:[#allocation5 + $0x260] sm:$0xff]
    %v320 = vld [vmem:[#allocation5 + $0x268] sm:$0xff]
    %v321 = vld [vmem:[#allocation5 + $0x270] sm:$0xff]
    %v322 = vld [vmem:[#allocation5 + $0x278] sm:$0xff]
    %v323 = vld [vmem:[#allocation5 + $0x280] sm:$0xff]
    %v324 = vld [vmem:[#allocation5 + $0x288] sm:$0xff]
    %v325 = vld [vmem:[#allocation5 + $0x290] sm:$0xff]
    %v326 = vld [vmem:[#allocation5 + $0x298] sm:$0xff]
    %v327 = vld [vmem:[#allocation5 + $0x2a0] sm:$0xff]
    %v328 = vld [vmem:[#allocation5 + $0x2a8] sm:$0xff]
    %v329 = vld [vmem:[#allocation5 + $0x2b0] sm:$0xff]
    %v330 = vld [vmem:[#allocation5 + $0x2b8] sm:$0xff]
    %v331 = vld [vmem:[#allocation5 + $0x2c0] sm:$0xff]
    %v332 = vld [vmem:[#allocation5 + $0x2c8] sm:$0xff]
    %v333 = vld [vmem:[#allocation5 + $0x2d0] sm:$0xff]
    %v334 = vld [vmem:[#allocation5 + $0x2d8] sm:$0xff]
    %v335 = vld [vmem:[#allocation5 + $0x2e0] sm:$0xff]
    %v336 = vld [vmem:[#allocation5 + $0x2e8] sm:$0xff]
    %v337 = vld [vmem:[#allocation5 + $0x2f0] sm:$0xff]
    %v338 = vld [vmem:[#allocation5 + $0x2f8] sm:$0xff]
    %v339 = vld [vmem:[#allocation5 + $0x300] sm:$0xff]
    %v340 = vld [vmem:[#allocation5 + $0x308] sm:$0xff]
    %v341 = vld [vmem:[#allocation5 + $0x310] sm:$0xff]
    %v342 = vld [vmem:[#allocation5 + $0x318] sm:$0xff]
    %v343 = vld [vmem:[#allocation5 + $0x320] sm:$0xff]
    %v344 = vld [vmem:[#allocation5 + $0x328] sm:$0xff]
    %v345 = vld [vmem:[#allocation5 + $0x330] sm:$0xff]
    %v346 = vld [vmem:[#allocation5 + $0x338] sm:$0xff]
    %v347 = vld [vmem:[#allocation5 + $0x340] sm:$0xff]
    %v348 = vld [vmem:[#allocation5 + $0x348] sm:$0xff]
    %v349 = vld [vmem:[#allocation5 + $0x350] sm:$0xff]
    %v350 = vld [vmem:[#allocation5 + $0x358] sm:$0xff]
    %v351 = vld [vmem:[#allocation5 + $0x360] sm:$0xff]
    %v352 = vld [vmem:[#allocation5 + $0x368] sm:$0xff]
    %v353 = vld [vmem:[#allocation5 + $0x370] sm:$0xff]
    %v354 = vld [vmem:[#allocation5 + $0x378] sm:$0xff]
    %v355 = vld [vmem:[#allocation5 + $0x380] sm:$0xff]
    %v356 = vld [vmem:[#allocation5 + $0x388] sm:$0xff]
    %v357 = vld [vmem:[#allocation5 + $0x390] sm:$0xff]
    %v358 = vld [vmem:[#allocation5 + $0x398] sm:$0xff]
    %v359 = vld [vmem:[#allocation5 + $0x3a0] sm:$0xff]
    %v360 = vld [vmem:[#allocation5 + $0x3a8] sm:$0xff]
    %v361 = vld [vmem:[#allocation5 + $0x3b0] sm:$0xff]
    %v362 = vld [vmem:[#allocation5 + $0x3b8] sm:$0xff]
    %v363 = vld [vmem:[#allocation5 + $0x3c0] sm:$0xff]
    %v364 = vld [vmem:[#allocation5 + $0x3c8] sm:$0xff]
    %v365 = vld [vmem:[#allocation5 + $0x3d0] sm:$0xff]
    %v366 = vld [vmem:[#allocation5 + $0x3d8] sm:$0xff]
    %v367 = vld [vmem:[#allocation5 + $0x3e0] sm:$0xff]
    %v368 = vld [vmem:[#allocation5 + $0x3e8] sm:$0xff]
    %v369 = vld [vmem:[#allocation5 + $0x3f0] sm:$0xff]
    %v370 = vld [vmem:[#allocation5 + $0x3f8] sm:$0xff]
    %v371 = vld [vmem:[#allocation7] sm:$0xf]
    %v373 = vlaneseq
    %v374 = vshrl.u32 %v373, 7
    %v375 = vsub.s32 0, %v374
    %v376 = vrot.slane %v371, %v375
    %v377 = vlaneseq
    %v378 = vshrl.u32 %v377, 7
    %v379 = vsub.s32 1, %v378
    %v380 = vrot.slane %v371, %v379
    %v381 = vlaneseq
    %v382 = vshrl.u32 %v381, 7
    %v383 = vsub.s32 2, %v382
    %v384 = vrot.slane %v371, %v383
    %v385 = vlaneseq
    %v386 = vshrl.u32 %v385, 7
    %v387 = vsub.s32 3, %v386
    %v388 = vrot.slane %v371, %v387
    %v395 = vunpack.c.l.b16 %v241
    %v396 = vunpack.c.h.b16 %v241
    %v397 = vunpack.c.l.b16 %v242
    %v398 = vunpack.c.h.b16 %v242
    %v399 = vpack.c.b16 %v395, %v395
    %v400 = vpack.c.b16 %v396, %v396
    %v401 = vpack.c.b16 %v397, %v397
    %v402 = vpack.c.b16 %v398, %v398
    %v535 = vunpack.c.l.b16 %v243
    %v536 = vunpack.c.h.b16 %v243
    %v537 = vunpack.c.l.b16 %v244
    %v538 = vunpack.c.h.b16 %v244
    %v539 = vunpack.c.l.b16 %v245
    %v540 = vunpack.c.h.b16 %v245
    %v541 = vunpack.c.l.b16 %v246
    %v542 = vunpack.c.h.b16 %v246
    %v543 = vunpack.c.l.b16 %v247
    %v544 = vunpack.c.h.b16 %v247
    %v545 = vunpack.c.l.b16 %v248
    %v546 = vunpack.c.h.b16 %v248
    %v547 = vunpack.c.l.b16 %v249
    %v548 = vunpack.c.h.b16 %v249
    %v549 = vunpack.c.l.b16 %v250
    %v550 = vunpack.c.h.b16 %v250
    %v551 = vunpack.c.l.b16 %v251
    %v552 = vunpack.c.h.b16 %v251
    %v553 = vunpack.c.l.b16 %v252
    %v554 = vunpack.c.h.b16 %v252
    %v555 = vunpack.c.l.b16 %v253
    %v556 = vunpack.c.h.b16 %v253
    %v557 = vunpack.c.l.b16 %v254
    %v558 = vunpack.c.h.b16 %v254
    %v559 = vunpack.c.l.b16 %v255
    %v560 = vunpack.c.h.b16 %v255
    %v561 = vunpack.c.l.b16 %v256
    %v562 = vunpack.c.h.b16 %v256
    %v563 = vunpack.c.l.b16 %v257
    %v564 = vunpack.c.h.b16 %v257
    %v565 = vunpack.c.l.b16 %v258
    %v566 = vunpack.c.h.b16 %v258
    %v567 = vunpack.c.l.b16 %v259
    %v568 = vunpack.c.h.b16 %v259
    %v569 = vunpack.c.l.b16 %v260
    %v570 = vunpack.c.h.b16 %v260
    %v571 = vunpack.c.l.b16 %v261
    %v572 = vunpack.c.h.b16 %v261
    %v573 = vunpack.c.l.b16 %v262
    %v574 = vunpack.c.h.b16 %v262
    %v575 = vunpack.c.l.b16 %v263
    %v576 = vunpack.c.h.b16 %v263
    %v577 = vunpack.c.l.b16 %v264
    %v578 = vunpack.c.h.b16 %v264
    %v579 = vunpack.c.l.b16 %v265
    %v580 = vunpack.c.h.b16 %v265
    %v581 = vunpack.c.l.b16 %v266
    %v582 = vunpack.c.h.b16 %v266
    %v583 = vunpack.c.l.b16 %v267
    %v584 = vunpack.c.h.b16 %v267
    %v585 = vunpack.c.l.b16 %v268
    %v586 = vunpack.c.h.b16 %v268
    %v587 = vunpack.c.l.b16 %v269
    %v588 = vunpack.c.h.b16 %v269
    %v589 = vunpack.c.l.b16 %v270
    %v590 = vunpack.c.h.b16 %v270
    %v591 = vunpack.c.l.b16 %v271
    %v592 = vunpack.c.h.b16 %v271
    %v593 = vunpack.c.l.b16 %v272
    %v594 = vunpack.c.h.b16 %v272
    %v595 = vunpack.c.l.b16 %v273
    %v596 = vunpack.c.h.b16 %v273
    %v597 = vunpack.c.l.b16 %v274
    %v598 = vunpack.c.h.b16 %v274
    %v599 = vunpack.c.l.b16 %v275
    %v600 = vunpack.c.h.b16 %v275
    %v601 = vunpack.c.l.b16 %v276
    %v602 = vunpack.c.h.b16 %v276
    %v603 = vunpack.c.l.b16 %v277
    %v604 = vunpack.c.h.b16 %v277
    %v605 = vunpack.c.l.b16 %v278
    %v606 = vunpack.c.h.b16 %v278
    %v607 = vunpack.c.l.b16 %v279
    %v608 = vunpack.c.h.b16 %v279
    %v609 = vunpack.c.l.b16 %v280
    %v610 = vunpack.c.h.b16 %v280
    %v611 = vunpack.c.l.b16 %v281
    %v612 = vunpack.c.h.b16 %v281
    %v613 = vunpack.c.l.b16 %v282
    %v614 = vunpack.c.h.b16 %v282
    %v615 = vunpack.c.l.b16 %v283
    %v616 = vunpack.c.h.b16 %v283
    %v617 = vunpack.c.l.b16 %v284
    %v618 = vunpack.c.h.b16 %v284
    %v619 = vunpack.c.l.b16 %v285
    %v620 = vunpack.c.h.b16 %v285
    %v621 = vunpack.c.l.b16 %v286
    %v622 = vunpack.c.h.b16 %v286
    %v623 = vunpack.c.l.b16 %v287
    %v624 = vunpack.c.h.b16 %v287
    %v625 = vunpack.c.l.b16 %v288
    %v626 = vunpack.c.h.b16 %v288
    %v627 = vunpack.c.l.b16 %v289
    %v628 = vunpack.c.h.b16 %v289
    %v629 = vunpack.c.l.b16 %v290
    %v630 = vunpack.c.h.b16 %v290
    %v631 = vunpack.c.l.b16 %v291
    %v632 = vunpack.c.h.b16 %v291
    %v633 = vunpack.c.l.b16 %v292
    %v634 = vunpack.c.h.b16 %v292
    %v635 = vunpack.c.l.b16 %v293
    %v636 = vunpack.c.h.b16 %v293
    %v637 = vunpack.c.l.b16 %v294
    %v638 = vunpack.c.h.b16 %v294
    %v639 = vunpack.c.l.b16 %v295
    %v640 = vunpack.c.h.b16 %v295
    %v641 = vunpack.c.l.b16 %v296
    %v642 = vunpack.c.h.b16 %v296
    %v643 = vunpack.c.l.b16 %v297
    %v644 = vunpack.c.h.b16 %v297
    %v645 = vunpack.c.l.b16 %v298
    %v646 = vunpack.c.h.b16 %v298
    %v647 = vunpack.c.l.b16 %v299
    %v648 = vunpack.c.h.b16 %v299
    %v649 = vunpack.c.l.b16 %v300
    %v650 = vunpack.c.h.b16 %v300
    %v651 = vunpack.c.l.b16 %v301
    %v652 = vunpack.c.h.b16 %v301
    %v653 = vunpack.c.l.b16 %v302
    %v654 = vunpack.c.h.b16 %v302
    %v655 = vunpack.c.l.b16 %v303
    %v656 = vunpack.c.h.b16 %v303
    %v657 = vunpack.c.l.b16 %v304
    %v658 = vunpack.c.h.b16 %v304
    %v659 = vunpack.c.l.b16 %v305
    %v660 = vunpack.c.h.b16 %v305
    %v661 = vunpack.c.l.b16 %v306
    %v662 = vunpack.c.h.b16 %v306
    %v663 = vunpack.c.l.b16 %v307
    %v664 = vunpack.c.h.b16 %v307
    %v665 = vunpack.c.l.b16 %v308
    %v666 = vunpack.c.h.b16 %v308
    %v667 = vunpack.c.l.b16 %v309
    %v668 = vunpack.c.h.b16 %v309
    %v669 = vunpack.c.l.b16 %v310
    %v670 = vunpack.c.h.b16 %v310
    %v671 = vunpack.c.l.b16 %v311
    %v672 = vunpack.c.h.b16 %v311
    %v673 = vunpack.c.l.b16 %v312
    %v674 = vunpack.c.h.b16 %v312
    %v675 = vunpack.c.l.b16 %v313
    %v676 = vunpack.c.h.b16 %v313
    %v677 = vunpack.c.l.b16 %v314
    %v678 = vunpack.c.h.b16 %v314
    %v679 = vunpack.c.l.b16 %v315
    %v680 = vunpack.c.h.b16 %v315
    %v681 = vunpack.c.l.b16 %v316
    %v682 = vunpack.c.h.b16 %v316
    %v683 = vunpack.c.l.b16 %v317
    %v684 = vunpack.c.h.b16 %v317
    %v685 = vunpack.c.l.b16 %v318
    %v686 = vunpack.c.h.b16 %v318
    %v687 = vunpack.c.l.b16 %v319
    %v688 = vunpack.c.h.b16 %v319
    %v689 = vunpack.c.l.b16 %v320
    %v690 = vunpack.c.h.b16 %v320
    %v691 = vunpack.c.l.b16 %v321
    %v692 = vunpack.c.h.b16 %v321
    %v693 = vunpack.c.l.b16 %v322
    %v694 = vunpack.c.h.b16 %v322
    %v695 = vunpack.c.l.b16 %v323
    %v696 = vunpack.c.h.b16 %v323
    %v697 = vunpack.c.l.b16 %v324
    %v698 = vunpack.c.h.b16 %v324
    %v699 = vunpack.c.l.b16 %v325
    %v700 = vunpack.c.h.b16 %v325
    %v701 = vunpack.c.l.b16 %v326
    %v702 = vunpack.c.h.b16 %v326
    %v703 = vunpack.c.l.b16 %v327
    %v704 = vunpack.c.h.b16 %v327
    %v705 = vunpack.c.l.b16 %v328
    %v706 = vunpack.c.h.b16 %v328
    %v707 = vunpack.c.l.b16 %v329
    %v708 = vunpack.c.h.b16 %v329
    %v709 = vunpack.c.l.b16 %v330
    %v710 = vunpack.c.h.b16 %v330
    %v711 = vunpack.c.l.b16 %v331
    %v712 = vunpack.c.h.b16 %v331
    %v713 = vunpack.c.l.b16 %v332
    %v714 = vunpack.c.h.b16 %v332
    %v715 = vunpack.c.l.b16 %v333
    %v716 = vunpack.c.h.b16 %v333
    %v717 = vunpack.c.l.b16 %v334
    %v718 = vunpack.c.h.b16 %v334
    %v719 = vunpack.c.l.b16 %v335
    %v720 = vunpack.c.h.b16 %v335
    %v721 = vunpack.c.l.b16 %v336
    %v722 = vunpack.c.h.b16 %v336
    %v723 = vunpack.c.l.b16 %v337
    %v724 = vunpack.c.h.b16 %v337
    %v725 = vunpack.c.l.b16 %v338
    %v726 = vunpack.c.h.b16 %v338
    %v727 = vunpack.c.l.b16 %v339
    %v728 = vunpack.c.h.b16 %v339
    %v729 = vunpack.c.l.b16 %v340
    %v730 = vunpack.c.h.b16 %v340
    %v731 = vunpack.c.l.b16 %v341
    %v732 = vunpack.c.h.b16 %v341
    %v733 = vunpack.c.l.b16 %v342
    %v734 = vunpack.c.h.b16 %v342
    %v735 = vunpack.c.l.b16 %v343
    %v736 = vunpack.c.h.b16 %v343
    %v737 = vunpack.c.l.b16 %v344
    %v738 = vunpack.c.h.b16 %v344
    %v739 = vunpack.c.l.b16 %v345
    %v740 = vunpack.c.h.b16 %v345
    %v741 = vunpack.c.l.b16 %v346
    %v742 = vunpack.c.h.b16 %v346
    %v743 = vunpack.c.l.b16 %v347
    %v744 = vunpack.c.h.b16 %v347
    %v745 = vunpack.c.l.b16 %v348
    %v746 = vunpack.c.h.b16 %v348
    %v747 = vunpack.c.l.b16 %v349
    %v748 = vunpack.c.h.b16 %v349
    %v749 = vunpack.c.l.b16 %v350
    %v750 = vunpack.c.h.b16 %v350
    %v751 = vunpack.c.l.b16 %v351
    %v752 = vunpack.c.h.b16 %v351
    %v753 = vunpack.c.l.b16 %v352
    %v754 = vunpack.c.h.b16 %v352
    %v755 = vunpack.c.l.b16 %v353
    %v756 = vunpack.c.h.b16 %v353
    %v757 = vunpack.c.l.b16 %v354
    %v758 = vunpack.c.h.b16 %v354
    %v759 = vunpack.c.l.b16 %v355
    %v760 = vunpack.c.h.b16 %v355
    %v761 = vunpack.c.l.b16 %v356
    %v762 = vunpack.c.h.b16 %v356
    %v763 = vunpack.c.l.b16 %v357
    %v764 = vunpack.c.h.b16 %v357
    %v765 = vunpack.c.l.b16 %v358
    %v766 = vunpack.c.h.b16 %v358
    %v767 = vunpack.c.l.b16 %v359
    %v768 = vunpack.c.h.b16 %v359
    %v769 = vunpack.c.l.b16 %v360
    %v770 = vunpack.c.h.b16 %v360
    %v771 = vunpack.c.l.b16 %v361
    %v772 = vunpack.c.h.b16 %v361
    %v773 = vunpack.c.l.b16 %v362
    %v774 = vunpack.c.h.b16 %v362
    %v775 = vunpack.c.l.b16 %v363
    %v776 = vunpack.c.h.b16 %v363
    %v777 = vunpack.c.l.b16 %v364
    %v778 = vunpack.c.h.b16 %v364
    %v779 = vunpack.c.l.b16 %v365
    %v780 = vunpack.c.h.b16 %v365
    %v781 = vunpack.c.l.b16 %v366
    %v782 = vunpack.c.h.b16 %v366
    %v783 = vunpack.c.l.b16 %v367
    %v784 = vunpack.c.h.b16 %v367
    %v785 = vunpack.c.l.b16 %v368
    %v786 = vunpack.c.h.b16 %v368
    %v787 = vunpack.c.l.b16 %v369
    %v788 = vunpack.c.h.b16 %v369
    %v789 = vunpack.c.l.b16 %v370
    %v790 = vunpack.c.h.b16 %v370
    %v791 = vpack.c.b16 %v539, %v535
    %v792 = vpack.c.b16 %v540, %v536
    %v793 = vpack.c.b16 %v541, %v537
    %v794 = vpack.c.b16 %v542, %v538
    %v795 = vpack.c.b16 %v547, %v543
    %v796 = vpack.c.b16 %v548, %v544
    %v797 = vpack.c.b16 %v549, %v545
    %v798 = vpack.c.b16 %v550, %v546
    %v799 = vpack.c.b16 %v555, %v551
    %v800 = vpack.c.b16 %v556, %v552
    %v801 = vpack.c.b16 %v557, %v553
    %v802 = vpack.c.b16 %v558, %v554
    %v803 = vpack.c.b16 %v563, %v559
    %v804 = vpack.c.b16 %v564, %v560
    %v805 = vpack.c.b16 %v565, %v561
    %v806 = vpack.c.b16 %v566, %v562
    %v807 = vpack.c.b16 %v571, %v567
    %v808 = vpack.c.b16 %v572, %v568
    %v809 = vpack.c.b16 %v573, %v569
    %v810 = vpack.c.b16 %v574, %v570
    %v811 = vpack.c.b16 %v579, %v575
    %v812 = vpack.c.b16 %v580, %v576
    %v813 = vpack.c.b16 %v581, %v577
    %v814 = vpack.c.b16 %v582, %v578
    %v815 = vpack.c.b16 %v587, %v583
    %v816 = vpack.c.b16 %v588, %v584
    %v817 = vpack.c.b16 %v589, %v585
    %v818 = vpack.c.b16 %v590, %v586
    %v819 = vpack.c.b16 %v595, %v591
    %v820 = vpack.c.b16 %v596, %v592
    %v821 = vpack.c.b16 %v597, %v593
    %v822 = vpack.c.b16 %v598, %v594
    %v823 = vpack.c.b16 %v603, %v599
    %v824 = vpack.c.b16 %v604, %v600
    %v825 = vpack.c.b16 %v605, %v601
    %v826 = vpack.c.b16 %v606, %v602
    %v827 = vpack.c.b16 %v611, %v607
    %v828 = vpack.c.b16 %v612, %v608
    %v829 = vpack.c.b16 %v613, %v609
    %v830 = vpack.c.b16 %v614, %v610
    %v831 = vpack.c.b16 %v619, %v615
    %v832 = vpack.c.b16 %v620, %v616
    %v833 = vpack.c.b16 %v621, %v617
    %v834 = vpack.c.b16 %v622, %v618
    %v835 = vpack.c.b16 %v627, %v623
    %v836 = vpack.c.b16 %v628, %v624
    %v837 = vpack.c.b16 %v629, %v625
    %v838 = vpack.c.b16 %v630, %v626
    %v839 = vpack.c.b16 %v635, %v631
    %v840 = vpack.c.b16 %v636, %v632
    %v841 = vpack.c.b16 %v637, %v633
    %v842 = vpack.c.b16 %v638, %v634
    %v843 = vpack.c.b16 %v643, %v639
    %v844 = vpack.c.b16 %v644, %v640
    %v845 = vpack.c.b16 %v645, %v641
    %v846 = vpack.c.b16 %v646, %v642
    %v847 = vpack.c.b16 %v651, %v647
    %v848 = vpack.c.b16 %v652, %v648
    %v849 = vpack.c.b16 %v653, %v649
    %v850 = vpack.c.b16 %v654, %v650
    %v851 = vpack.c.b16 %v659, %v655
    %v852 = vpack.c.b16 %v660, %v656
    %v853 = vpack.c.b16 %v661, %v657
    %v854 = vpack.c.b16 %v662, %v658
    %v855 = vpack.c.b16 %v667, %v663
    %v856 = vpack.c.b16 %v668, %v664
    %v857 = vpack.c.b16 %v669, %v665
    %v858 = vpack.c.b16 %v670, %v666
    %v859 = vpack.c.b16 %v675, %v671
    %v860 = vpack.c.b16 %v676, %v672
    %v861 = vpack.c.b16 %v677, %v673
    %v862 = vpack.c.b16 %v678, %v674
    %v863 = vpack.c.b16 %v683, %v679
    %v864 = vpack.c.b16 %v684, %v680
    %v865 = vpack.c.b16 %v685, %v681
    %v866 = vpack.c.b16 %v686, %v682
    %v867 = vpack.c.b16 %v691, %v687
    %v868 = vpack.c.b16 %v692, %v688
    %v869 = vpack.c.b16 %v693, %v689
    %v870 = vpack.c.b16 %v694, %v690
    %v871 = vpack.c.b16 %v699, %v695
    %v872 = vpack.c.b16 %v700, %v696
    %v873 = vpack.c.b16 %v701, %v697
    %v874 = vpack.c.b16 %v702, %v698
    %v875 = vpack.c.b16 %v707, %v703
    %v876 = vpack.c.b16 %v708, %v704
    %v877 = vpack.c.b16 %v709, %v705
    %v878 = vpack.c.b16 %v710, %v706
    %v879 = vpack.c.b16 %v715, %v711
    %v880 = vpack.c.b16 %v716, %v712
    %v881 = vpack.c.b16 %v717, %v713
    %v882 = vpack.c.b16 %v718, %v714
    %v883 = vpack.c.b16 %v723, %v719
    %v884 = vpack.c.b16 %v724, %v720
    %v885 = vpack.c.b16 %v725, %v721
    %v886 = vpack.c.b16 %v726, %v722
    %v887 = vpack.c.b16 %v731, %v727
    %v888 = vpack.c.b16 %v732, %v728
    %v889 = vpack.c.b16 %v733, %v729
    %v890 = vpack.c.b16 %v734, %v730
    %v891 = vpack.c.b16 %v739, %v735
    %v892 = vpack.c.b16 %v740, %v736
    %v893 = vpack.c.b16 %v741, %v737
    %v894 = vpack.c.b16 %v742, %v738
    %v895 = vpack.c.b16 %v747, %v743
    %v896 = vpack.c.b16 %v748, %v744
    %v897 = vpack.c.b16 %v749, %v745
    %v898 = vpack.c.b16 %v750, %v746
    %v899 = vpack.c.b16 %v755, %v751
    %v900 = vpack.c.b16 %v756, %v752
    %v901 = vpack.c.b16 %v757, %v753
    %v902 = vpack.c.b16 %v758, %v754
    %v903 = vpack.c.b16 %v763, %v759
    %v904 = vpack.c.b16 %v764, %v760
    %v905 = vpack.c.b16 %v765, %v761
    %v906 = vpack.c.b16 %v766, %v762
    %v907 = vpack.c.b16 %v771, %v767
    %v908 = vpack.c.b16 %v772, %v768
    %v909 = vpack.c.b16 %v773, %v769
    %v910 = vpack.c.b16 %v774, %v770
    %v911 = vpack.c.b16 %v779, %v775
    %v912 = vpack.c.b16 %v780, %v776
    %v913 = vpack.c.b16 %v781, %v777
    %v914 = vpack.c.b16 %v782, %v778
    %v915 = vpack.c.b16 %v787, %v783
    %v916 = vpack.c.b16 %v788, %v784
    %v917 = vpack.c.b16 %v789, %v785
    %v918 = vpack.c.b16 %v790, %v786
    %1047 = vmatprep.subr.bf16.mxu0 %v792
    %1048 = vmatpush1.bf16.msra.mxu0 %v791
    %1049 = vmatprep.subr.bf16.mxu0 %v796
    %1050 = vmatpush1.bf16.msra.mxu0 %v795
    %1051 = vmatprep.subr.bf16.mxu0 %v800
    %1052 = vmatpush1.bf16.msra.mxu0 %v799
    %1053 = vmatprep.subr.bf16.mxu0 %v804
    %1054 = vmatpush1.bf16.msra.mxu0 %v803
    %1055 = vmatprep.subr.bf16.mxu0 %v808
    %1056 = vmatpush1.bf16.msra.mxu0 %v807
    %1057 = vmatprep.subr.bf16.mxu0 %v812
    %1058 = vmatpush1.bf16.msra.mxu0 %v811
    %1059 = vmatprep.subr.bf16.mxu0 %v816
    %1060 = vmatpush1.bf16.msra.mxu0 %v815
    %1061 = vmatprep.subr.bf16.mxu0 %v820
    %1062 = vmatpush1.bf16.msra.mxu0 %v819
    %1063 = vmatprep.subr.bf16.mxu0 %v824
    %1064 = vmatpush1.bf16.msra.mxu0 %v823
    %1065 = vmatprep.subr.bf16.mxu0 %v828
    %1066 = vmatpush1.bf16.msra.mxu0 %v827
    %1067 = vmatprep.subr.bf16.mxu0 %v832
    %1068 = vmatpush1.bf16.msra.mxu0 %v831
    %1069 = vmatprep.subr.bf16.mxu0 %v836
    %1070 = vmatpush1.bf16.msra.mxu0 %v835
    %1071 = vmatprep.subr.bf16.mxu0 %v840
    %1072 = vmatpush1.bf16.msra.mxu0 %v839
    %1073 = vmatprep.subr.bf16.mxu0 %v844
    %1074 = vmatpush1.bf16.msra.mxu0 %v843
    %1075 = vmatprep.subr.bf16.mxu0 %v848
    %1076 = vmatpush1.bf16.msra.mxu0 %v847
    %1077 = vmatprep.subr.bf16.mxu0 %v852
    %1078 = vmatpush1.bf16.msra.mxu0 %v851
    %1079 = vmatprep.mubr.bf16.mxu0 %v400
    %1080 = vmatmul.mubr.bf16.gmra.mrb[0].mxu0 %v399
    %v1081 = vpop.f32.mrb[0].mxu0
    %v1082 = vadd.f32 %v376, %v1081
    %v1083 = vpop.f32.mrb[0].mxu0
    %v1084 = vadd.f32 %v380, %v1083
    %v1085 = vpop.f32.mrb[0].mxu0
    %v1086 = vpop.f32.mrb[0].mxu0
    %1087 = vdwg.mxu0
    %1088 = vmatprep.subr.bf16.mxu0 %v856
    %1089 = vmatpush1.bf16.msra.mxu0 %v855
    %1090 = vmatprep.subr.bf16.mxu0 %v860
    %1091 = vmatpush1.bf16.msra.mxu0 %v859
    %1092 = vmatprep.subr.bf16.mxu0 %v864
    %1093 = vmatpush1.bf16.msra.mxu0 %v863
    %1094 = vmatprep.subr.bf16.mxu0 %v868
    %1095 = vmatpush1.bf16.msra.mxu0 %v867
    %1096 = vmatprep.subr.bf16.mxu0 %v872
    %1097 = vmatpush1.bf16.msra.mxu0 %v871
    %1098 = vmatprep.subr.bf16.mxu0 %v876
    %1099 = vmatpush1.bf16.msra.mxu0 %v875
    %1100 = vmatprep.subr.bf16.mxu0 %v880
    %1101 = vmatpush1.bf16.msra.mxu0 %v879
    %1102 = vmatprep.subr.bf16.mxu0 %v884
    %1103 = vmatpush1.bf16.msra.mxu0 %v883
    %1104 = vmatprep.subr.bf16.mxu0 %v888
    %1105 = vmatpush1.bf16.msra.mxu0 %v887
    %1106 = vmatprep.subr.bf16.mxu0 %v892
    %1107 = vmatpush1.bf16.msra.mxu0 %v891
    %1108 = vmatprep.subr.bf16.mxu0 %v896
    %1109 = vmatpush1.bf16.msra.mxu0 %v895
    %1110 = vmatprep.subr.bf16.mxu0 %v900
    %1111 = vmatpush1.bf16.msra.mxu0 %v899
    %1112 = vmatprep.subr.bf16.mxu0 %v904
    %1113 = vmatpush1.bf16.msra.mxu0 %v903
    %1114 = vmatprep.subr.bf16.mxu0 %v908
    %1115 = vmatpush1.bf16.msra.mxu0 %v907
    %1116 = vmatprep.subr.bf16.mxu0 %v912
    %1117 = vmatpush1.bf16.msra.mxu0 %v911
    %1118 = vmatprep.subr.bf16.mxu0 %v916
    %1119 = vmatpush1.bf16.msra.mxu0 %v915
    %1120 = vmatprep.mubr.bf16.mxu0 %v402
    %1121 = vmatmul.mubr.bf16.gmra.mrb[0].mxu0 %v401
    %v1122 = vpop.f32.mrb[0].mxu0
    %v1123 = vadd.f32 %v1082, %v1122
    %v1124 = vpop.f32.mrb[0].mxu0
    %v1125 = vadd.f32 %v1084, %v1124
    %v1126 = vpop.f32.mrb[0].mxu0
    %v1127 = vpop.f32.mrb[0].mxu0
    %1128 = vdwg.mxu0
    %1129 = vmatprep.subr.bf16.mxu0 %v794
    %1130 = vmatpush1.bf16.msra.mxu0 %v793
    %1131 = vmatprep.subr.bf16.mxu0 %v798
    %1132 = vmatpush1.bf16.msra.mxu0 %v797
    %1133 = vmatprep.subr.bf16.mxu0 %v802
    %1134 = vmatpush1.bf16.msra.mxu0 %v801
    %1135 = vmatprep.subr.bf16.mxu0 %v806
    %1136 = vmatpush1.bf16.msra.mxu0 %v805
    %1137 = vmatprep.subr.bf16.mxu0 %v810
    %1138 = vmatpush1.bf16.msra.mxu0 %v809
    %1139 = vmatprep.subr.bf16.mxu0 %v814
    %1140 = vmatpush1.bf16.msra.mxu0 %v813
    %1141 = vmatprep.subr.bf16.mxu0 %v818
    %1142 = vmatpush1.bf16.msra.mxu0 %v817
    %1143 = vmatprep.subr.bf16.mxu0 %v822
    %1144 = vmatpush1.bf16.msra.mxu0 %v821
    %1145 = vmatprep.subr.bf16.mxu0 %v826
    %1146 = vmatpush1.bf16.msra.mxu0 %v825
    %1147 = vmatprep.subr.bf16.mxu0 %v830
    %1148 = vmatpush1.bf16.msra.mxu0 %v829
    %1149 = vmatprep.subr.bf16.mxu0 %v834
    %1150 = vmatpush1.bf16.msra.mxu0 %v833
    %1151 = vmatprep.subr.bf16.mxu0 %v838
    %1152 = vmatpush1.bf16.msra.mxu0 %v837
    %1153 = vmatprep.subr.bf16.mxu0 %v842
    %1154 = vmatpush1.bf16.msra.mxu0 %v841
    %1155 = vmatprep.subr.bf16.mxu0 %v846
    %1156 = vmatpush1.bf16.msra.mxu0 %v845
    %1157 = vmatprep.subr.bf16.mxu0 %v850
    %1158 = vmatpush1.bf16.msra.mxu0 %v849
    %1159 = vmatprep.subr.bf16.mxu0 %v854
    %1160 = vmatpush1.bf16.msra.mxu0 %v853
    %1161 = vmatprep.mubr.bf16.mxu0 %v400
    %1162 = vmatmul.mubr.bf16.gmra.mrb[0].mxu0 %v399
    %v1163 = vpop.f32.mrb[0].mxu0
    %v1164 = vadd.f32 %v384, %v1163
    %v1165 = vpop.f32.mrb[0].mxu0
    %v1166 = vadd.f32 %v388, %v1165
    %v1167 = vpop.f32.mrb[0].mxu0
    %v1168 = vpop.f32.mrb[0].mxu0
    %1169 = vdwg.mxu0
    %1170 = vmatprep.subr.bf16.mxu0 %v858
    %1171 = vmatpush1.bf16.msra.mxu0 %v857
    %1172 = vmatprep.subr.bf16.mxu0 %v862
    %1173 = vmatpush1.bf16.msra.mxu0 %v861
    %1174 = vmatprep.subr.bf16.mxu0 %v866
    %1175 = vmatpush1.bf16.msra.mxu0 %v865
    %1176 = vmatprep.subr.bf16.mxu0 %v870
    %1177 = vmatpush1.bf16.msra.mxu0 %v869
    %1178 = vmatprep.subr.bf16.mxu0 %v874
    %1179 = vmatpush1.bf16.msra.mxu0 %v873
    %1180 = vmatprep.subr.bf16.mxu0 %v878
    %1181 = vmatpush1.bf16.msra.mxu0 %v877
    %1182 = vmatprep.subr.bf16.mxu0 %v882
    %1183 = vmatpush1.bf16.msra.mxu0 %v881
    %1184 = vmatprep.subr.bf16.mxu0 %v886
    %1185 = vmatpush1.bf16.msra.mxu0 %v885
    %1186 = vmatprep.subr.bf16.mxu0 %v890
    %1187 = vmatpush1.bf16.msra.mxu0 %v889
    %1188 = vmatprep.subr.bf16.mxu0 %v894
    %1189 = vmatpush1.bf16.msra.mxu0 %v893
    %1190 = vmatprep.subr.bf16.mxu0 %v898
    %1191 = vmatpush1.bf16.msra.mxu0 %v897
    %1192 = vmatprep.subr.bf16.mxu0 %v902
    %1193 = vmatpush1.bf16.msra.mxu0 %v901
    %1194 = vmatprep.subr.bf16.mxu0 %v906
    %1195 = vmatpush1.bf16.msra.mxu0 %v905
    %1196 = vmatprep.subr.bf16.mxu0 %v910
    %1197 = vmatpush1.bf16.msra.mxu0 %v909
    %1198 = vmatprep.subr.bf16.mxu0 %v914
    %1199 = vmatpush1.bf16.msra.mxu0 %v913
    %1200 = vmatprep.subr.bf16.mxu0 %v918
    %1201 = vmatpush1.bf16.msra.mxu0 %v917
    %1202 = vmatprep.mubr.bf16.mxu0 %v402
    %1203 = vmatmul.mubr.bf16.gmra.mrb[0].mxu0 %v401
    %v1204 = vpop.f32.mrb[0].mxu0
    %v1205 = vadd.f32 %v1164, %v1204
    %v1206 = vpop.f32.mrb[0].mxu0
    %v1207 = vadd.f32 %v1166, %v1206
    %v1208 = vpop.f32.mrb[0].mxu0
    %v1209 = vpop.f32.mrb[0].mxu0
    %1210 = vdwg.mxu0
    %v1211 = vlaneseq
    %v1212 = vand.u32 %v1211, 127
    %v1213 = vadd.s32 %v1212, 128
    %v1214 = vadd.s32 %v1212, 256
    %v1215 = vadd.s32 %v1212, 384
    %vm1216 = vcmp.lt.s32.totalorder %v1212, 460
    %vm1217 = vcmp.lt.s32.totalorder %v1213, 460
    %vm1218 = vcmp.lt.s32.totalorder %v1214, 460
    %vm1219 = vcmp.lt.s32.totalorder %v1215, 460
    %v1220 = vsel %vm1216, 1, 0
    %v1221 = vsel %vm1217, 1, 0
    %v1222 = vsel %vm1218, 1, 0
    %v1223 = vsel %vm1219, 1, 0
    %v1224 = vcvt.s32.f32 %v1220
    %v1225 = vcvt.s32.f32 %v1221
    %v1226 = vcvt.s32.f32 %v1222
    %v1227 = vcvt.s32.f32 %v1223
    %v1228 = vadd.f32 %v1123, %v1125
    %v1229 = vadd.f32 %v1228, %v1205
    %v1230 = vadd.f32 %v1229, %v1207
    %1231 = vadd.xlane.f32.xlu0 %v1230
    %v1232 = vpop.xlane.xlu0 %1231
    %v1233 = vmul.f32 %v1232, 0.002173913
    %v1234 = vsub.f32 %v1123, %v1233
    %v1235 = vsub.f32 %v1125, %v1233
    %v1236 = vsub.f32 %v1205, %v1233
    %v1237 = vsub.f32 %v1207, %v1233
    %v1238 = vmul.f32 %v1234, %v1224
    %v1239 = vmul.f32 %v1235, %v1225
    %v1240 = vmul.f32 %v1236, %v1226
    %v1241 = vmul.f32 %v1237, %v1227
    %v1242 = vmul.f32 %v1238, %v1238
    %v1243 = vmul.f32 %v1239, %v1239
    %v1244 = vmul.f32 %v1240, %v1240
    %v1245 = vmul.f32 %v1241, %v1241
    %v1246 = vadd.f32 %v1242, %v1243
    %v1247 = vadd.f32 %v1246, %v1244
    %v1248 = vadd.f32 %v1247, %v1245
    %1249 = vadd.xlane.f32.xlu0 %v1248
    %v1250 = vpop.xlane.xlu0 %1249
    %v1251 = vmul.f32 %v1250, 0.002173913
    %v1252 = vadd.f32 %v1251, 1e-05
    %v1253 = vrsqrt.pop %v1252
    %v1254 = vmul.f32 %v1238, %v1253
    %v1255 = vmul.f32 %v1239, %v1253
    %v1256 = vmul.f32 %v1240, %v1253
    %v1257 = vmul.f32 %v1241, %v1253
    %v1258 = vld [vmem:[#allocation8] sm:$0xf]
    %v1260 = vlaneseq
    %v1261 = vshrl.u32 %v1260, 7
    %v1262 = vsub.s32 0, %v1261
    %v1263 = vrot.slane %v1258, %v1262
    %v1264 = vlaneseq
    %v1265 = vshrl.u32 %v1264, 7
    %v1266 = vsub.s32 1, %v1265
    %v1267 = vrot.slane %v1258, %v1266
    %v1268 = vlaneseq
    %v1269 = vshrl.u32 %v1268, 7
    %v1270 = vsub.s32 2, %v1269
    %v1271 = vrot.slane %v1258, %v1270
    %v1272 = vlaneseq
    %v1273 = vshrl.u32 %v1272, 7
    %v1274 = vsub.s32 3, %v1273
    %v1275 = vrot.slane %v1258, %v1274
    %v1280 = vmul.f32 %v1254, %v1263
    %v1281 = vmul.f32 %v1255, %v1267
    %v1282 = vmul.f32 %v1256, %v1271
    %v1283 = vmul.f32 %v1257, %v1275
    %v1284 = vld [vmem:[#allocation10] sm:$0xf]
    %v1286 = vlaneseq
    %v1287 = vshrl.u32 %v1286, 7
    %v1288 = vsub.s32 0, %v1287
    %v1289 = vrot.slane %v1284, %v1288
    %v1290 = vlaneseq
    %v1291 = vshrl.u32 %v1290, 7
    %v1292 = vsub.s32 1, %v1291
    %v1293 = vrot.slane %v1284, %v1292
    %v1294 = vlaneseq
    %v1295 = vshrl.u32 %v1294, 7
    %v1296 = vsub.s32 2, %v1295
    %v1297 = vrot.slane %v1284, %v1296
    %v1298 = vlaneseq
    %v1299 = vshrl.u32 %v1298, 7
    %v1300 = vsub.s32 3, %v1299
    %v1301 = vrot.slane %v1284, %v1300
    %v1306 = vadd.f32 %v1280, %v1289
    %v1307 = vadd.f32 %v1281, %v1293
    %v1308 = vadd.f32 %v1282, %v1297
    %v1309 = vadd.f32 %v1283, %v1301
    %v1310 = vmax.f32 %v1306, 0.0
    %v1311 = vmax.f32 %v1307, 0.0
    %v1312 = vmax.f32 %v1308, 0.0
    %v1313 = vmax.f32 %v1309, 0.0
    %v1314 = vpack.c.bf16 %v1310, %v1310
    %v1315 = vpack.c.bf16 %v1311, %v1311
    %v1316 = vpack.c.bf16 %v1312, %v1312
    %v1317 = vpack.c.bf16 %v1313, %v1313
    %v1318 = vld [vmem:[#allocation11] sm:$0xff]
    %v1319 = vld [vmem:[#allocation11 + $0x8] sm:$0xff]
    %v1320 = vld [vmem:[#allocation11 + $0x10] sm:$0xff]
    %v1321 = vld [vmem:[#allocation11 + $0x18] sm:$0xff]
    %v1322 = vld [vmem:[#allocation11 + $0x20] sm:$0xff]
    %v1323 = vld [vmem:[#allocation11 + $0x28] sm:$0xff]
    %v1324 = vld [vmem:[#allocation11 + $0x30] sm:$0xff]
    %v1325 = vld [vmem:[#allocation11 + $0x38] sm:$0xff]
    %v1326 = vld [vmem:[#allocation11 + $0x40] sm:$0xff]
    %v1327 = vld [vmem:[#allocation11 + $0x48] sm:$0xff]
    %v1328 = vld [vmem:[#allocation11 + $0x50] sm:$0xff]
    %v1329 = vld [vmem:[#allocation11 + $0x58] sm:$0xff]
    %v1330 = vld [vmem:[#allocation11 + $0x60] sm:$0xff]
    %v1331 = vld [vmem:[#allocation11 + $0x68] sm:$0xff]
    %v1332 = vld [vmem:[#allocation11 + $0x70] sm:$0xff]
    %v1333 = vld [vmem:[#allocation11 + $0x78] sm:$0xff]
    %v1334 = vld [vmem:[#allocation11 + $0x80] sm:$0xff]
    %v1335 = vld [vmem:[#allocation11 + $0x88] sm:$0xff]
    %v1336 = vld [vmem:[#allocation11 + $0x90] sm:$0xff]
    %v1337 = vld [vmem:[#allocation11 + $0x98] sm:$0xff]
    %v1338 = vld [vmem:[#allocation11 + $0xa0] sm:$0xff]
    %v1339 = vld [vmem:[#allocation11 + $0xa8] sm:$0xff]
    %v1340 = vld [vmem:[#allocation11 + $0xb0] sm:$0xff]
    %v1341 = vld [vmem:[#allocation11 + $0xb8] sm:$0xff]
    %v1342 = vld [vmem:[#allocation11 + $0xc0] sm:$0xff]
    %v1343 = vld [vmem:[#allocation11 + $0xc8] sm:$0xff]
    %v1344 = vld [vmem:[#allocation11 + $0xd0] sm:$0xff]
    %v1345 = vld [vmem:[#allocation11 + $0xd8] sm:$0xff]
    %v1346 = vld [vmem:[#allocation11 + $0xe0] sm:$0xff]
    %v1347 = vld [vmem:[#allocation11 + $0xe8] sm:$0xff]
    %v1348 = vld [vmem:[#allocation11 + $0xf0] sm:$0xff]
    %v1349 = vld [vmem:[#allocation11 + $0xf8] sm:$0xff]
    %v1350 = vld [vmem:[#allocation11 + $0x100] sm:$0xff]
    %v1351 = vld [vmem:[#allocation11 + $0x108] sm:$0xff]
    %v1352 = vld [vmem:[#allocation11 + $0x110] sm:$0xff]
    %v1353 = vld [vmem:[#allocation11 + $0x118] sm:$0xff]
    %v1354 = vld [vmem:[#allocation11 + $0x120] sm:$0xff]
    %v1355 = vld [vmem:[#allocation11 + $0x128] sm:$0xff]
    %v1356 = vld [vmem:[#allocation11 + $0x130] sm:$0xff]
    %v1357 = vld [vmem:[#allocation11 + $0x138] sm:$0xff]
    %v1358 = vld [vmem:[#allocation11 + $0x140] sm:$0xff]
    %v1359 = vld [vmem:[#allocation11 + $0x148] sm:$0xff]
    %v1360 = vld [vmem:[#allocation11 + $0x150] sm:$0xff]
    %v1361 = vld [vmem:[#allocation11 + $0x158] sm:$0xff]
    %v1362 = vld [vmem:[#allocation11 + $0x160] sm:$0xff]
    %v1363 = vld [vmem:[#allocation11 + $0x168] sm:$0xff]
    %v1364 = vld [vmem:[#allocation11 + $0x170] sm:$0xff]
    %v1365 = vld [vmem:[#allocation11 + $0x178] sm:$0xff]
    %v1366 = vld [vmem:[#allocation11 + $0x180] sm:$0xff]
    %v1367 = vld [vmem:[#allocation11 + $0x188] sm:$0xff]
    %v1368 = vld [vmem:[#allocation11 + $0x190] sm:$0xff]
    %v1369 = vld [vmem:[#allocation11 + $0x198] sm:$0xff]
    %v1370 = vld [vmem:[#allocation11 + $0x1a0] sm:$0xff]
    %v1371 = vld [vmem:[#allocation11 + $0x1a8] sm:$0xff]
    %v1372 = vld [vmem:[#allocation11 + $0x1b0] sm:$0xff]
    %v1373 = vld [vmem:[#allocation11 + $0x1b8] sm:$0xff]
    %v1374 = vld [vmem:[#allocation11 + $0x1c0] sm:$0xff]
    %v1375 = vld [vmem:[#allocation11 + $0x1c8] sm:$0xff]
    %v1376 = vld [vmem:[#allocation11 + $0x1d0] sm:$0xff]
    %v1377 = vld [vmem:[#allocation11 + $0x1d8] sm:$0xff]
    %v1378 = vld [vmem:[#allocation11 + $0x1e0] sm:$0xff]
    %v1379 = vld [vmem:[#allocation11 + $0x1e8] sm:$0xff]
    %v1380 = vld [vmem:[#allocation11 + $0x1f0] sm:$0xff]
    %v1381 = vld [vmem:[#allocation11 + $0x1f8] sm:$0xff]
    %v1382 = vld [vmem:[#allocation13] sm:$0x3]
    %v1384 = vlaneseq
    %v1385 = vshrl.u32 %v1384, 7
    %v1386 = vsub.s32 0, %v1385
    %v1387 = vrot.slane %v1382, %v1386
    %v1388 = vlaneseq
    %v1389 = vshrl.u32 %v1388, 7
    %v1390 = vsub.s32 1, %v1389
    %v1391 = vrot.slane %v1382, %v1390
    %v1458 = vunpack.c.l.b16 %v1318
    %v1459 = vunpack.c.h.b16 %v1318
    %v1460 = vunpack.c.l.b16 %v1319
    %v1461 = vunpack.c.h.b16 %v1319
    %v1462 = vunpack.c.l.b16 %v1320
    %v1463 = vunpack.c.h.b16 %v1320
    %v1464 = vunpack.c.l.b16 %v1321
    %v1465 = vunpack.c.h.b16 %v1321
    %v1466 = vunpack.c.l.b16 %v1322
    %v1467 = vunpack.c.h.b16 %v1322
    %v1468 = vunpack.c.l.b16 %v1323
    %v1469 = vunpack.c.h.b16 %v1323
    %v1470 = vunpack.c.l.b16 %v1324
    %v1471 = vunpack.c.h.b16 %v1324
    %v1472 = vunpack.c.l.b16 %v1325
    %v1473 = vunpack.c.h.b16 %v1325
    %v1474 = vunpack.c.l.b16 %v1326
    %v1475 = vunpack.c.h.b16 %v1326
    %v1476 = vunpack.c.l.b16 %v1327
    %v1477 = vunpack.c.h.b16 %v1327
    %v1478 = vunpack.c.l.b16 %v1328
    %v1479 = vunpack.c.h.b16 %v1328
    %v1480 = vunpack.c.l.b16 %v1329
    %v1481 = vunpack.c.h.b16 %v1329
    %v1482 = vunpack.c.l.b16 %v1330
    %v1483 = vunpack.c.h.b16 %v1330
    %v1484 = vunpack.c.l.b16 %v1331
    %v1485 = vunpack.c.h.b16 %v1331
    %v1486 = vunpack.c.l.b16 %v1332
    %v1487 = vunpack.c.h.b16 %v1332
    %v1488 = vunpack.c.l.b16 %v1333
    %v1489 = vunpack.c.h.b16 %v1333
    %v1490 = vunpack.c.l.b16 %v1334
    %v1491 = vunpack.c.h.b16 %v1334
    %v1492 = vunpack.c.l.b16 %v1335
    %v1493 = vunpack.c.h.b16 %v1335
    %v1494 = vunpack.c.l.b16 %v1336
    %v1495 = vunpack.c.h.b16 %v1336
    %v1496 = vunpack.c.l.b16 %v1337
    %v1497 = vunpack.c.h.b16 %v1337
    %v1498 = vunpack.c.l.b16 %v1338
    %v1499 = vunpack.c.h.b16 %v1338
    %v1500 = vunpack.c.l.b16 %v1339
    %v1501 = vunpack.c.h.b16 %v1339
    %v1502 = vunpack.c.l.b16 %v1340
    %v1503 = vunpack.c.h.b16 %v1340
    %v1504 = vunpack.c.l.b16 %v1341
    %v1505 = vunpack.c.h.b16 %v1341
    %v1506 = vunpack.c.l.b16 %v1342
    %v1507 = vunpack.c.h.b16 %v1342
    %v1508 = vunpack.c.l.b16 %v1343
    %v1509 = vunpack.c.h.b16 %v1343
    %v1510 = vunpack.c.l.b16 %v1344
    %v1511 = vunpack.c.h.b16 %v1344
    %v1512 = vunpack.c.l.b16 %v1345
    %v1513 = vunpack.c.h.b16 %v1345
    %v1514 = vunpack.c.l.b16 %v1346
    %v1515 = vunpack.c.h.b16 %v1346
    %v1516 = vunpack.c.l.b16 %v1347
    %v1517 = vunpack.c.h.b16 %v1347
    %v1518 = vunpack.c.l.b16 %v1348
    %v1519 = vunpack.c.h.b16 %v1348
    %v1520 = vunpack.c.l.b16 %v1349
    %v1521 = vunpack.c.h.b16 %v1349
    %v1522 = vunpack.c.l.b16 %v1350
    %v1523 = vunpack.c.h.b16 %v1350
    %v1524 = vunpack.c.l.b16 %v1351
    %v1525 = vunpack.c.h.b16 %v1351
    %v1526 = vunpack.c.l.b16 %v1352
    %v1527 = vunpack.c.h.b16 %v1352
    %v1528 = vunpack.c.l.b16 %v1353
    %v1529 = vunpack.c.h.b16 %v1353
    %v1530 = vunpack.c.l.b16 %v1354
    %v1531 = vunpack.c.h.b16 %v1354
    %v1532 = vunpack.c.l.b16 %v1355
    %v1533 = vunpack.c.h.b16 %v1355
    %v1534 = vunpack.c.l.b16 %v1356
    %v1535 = vunpack.c.h.b16 %v1356
    %v1536 = vunpack.c.l.b16 %v1357
    %v1537 = vunpack.c.h.b16 %v1357
    %v1538 = vunpack.c.l.b16 %v1358
    %v1539 = vunpack.c.h.b16 %v1358
    %v1540 = vunpack.c.l.b16 %v1359
    %v1541 = vunpack.c.h.b16 %v1359
    %v1542 = vunpack.c.l.b16 %v1360
    %v1543 = vunpack.c.h.b16 %v1360
    %v1544 = vunpack.c.l.b16 %v1361
    %v1545 = vunpack.c.h.b16 %v1361
    %v1546 = vunpack.c.l.b16 %v1362
    %v1547 = vunpack.c.h.b16 %v1362
    %v1548 = vunpack.c.l.b16 %v1363
    %v1549 = vunpack.c.h.b16 %v1363
    %v1550 = vunpack.c.l.b16 %v1364
    %v1551 = vunpack.c.h.b16 %v1364
    %v1552 = vunpack.c.l.b16 %v1365
    %v1553 = vunpack.c.h.b16 %v1365
    %v1554 = vunpack.c.l.b16 %v1366
    %v1555 = vunpack.c.h.b16 %v1366
    %v1556 = vunpack.c.l.b16 %v1367
    %v1557 = vunpack.c.h.b16 %v1367
    %v1558 = vunpack.c.l.b16 %v1368
    %v1559 = vunpack.c.h.b16 %v1368
    %v1560 = vunpack.c.l.b16 %v1369
    %v1561 = vunpack.c.h.b16 %v1369
    %v1562 = vunpack.c.l.b16 %v1370
    %v1563 = vunpack.c.h.b16 %v1370
    %v1564 = vunpack.c.l.b16 %v1371
    %v1565 = vunpack.c.h.b16 %v1371
    %v1566 = vunpack.c.l.b16 %v1372
    %v1567 = vunpack.c.h.b16 %v1372
    %v1568 = vunpack.c.l.b16 %v1373
    %v1569 = vunpack.c.h.b16 %v1373
    %v1570 = vunpack.c.l.b16 %v1374
    %v1571 = vunpack.c.h.b16 %v1374
    %v1572 = vunpack.c.l.b16 %v1375
    %v1573 = vunpack.c.h.b16 %v1375
    %v1574 = vunpack.c.l.b16 %v1376
    %v1575 = vunpack.c.h.b16 %v1376
    %v1576 = vunpack.c.l.b16 %v1377
    %v1577 = vunpack.c.h.b16 %v1377
    %v1578 = vunpack.c.l.b16 %v1378
    %v1579 = vunpack.c.h.b16 %v1378
    %v1580 = vunpack.c.l.b16 %v1379
    %v1581 = vunpack.c.h.b16 %v1379
    %v1582 = vunpack.c.l.b16 %v1380
    %v1583 = vunpack.c.h.b16 %v1380
    %v1584 = vunpack.c.l.b16 %v1381
    %v1585 = vunpack.c.h.b16 %v1381
    %v1586 = vpack.c.b16 %v1460, %v1458
    %v1587 = vpack.c.b16 %v1461, %v1459
    %v1588 = vpack.c.b16 %v1464, %v1462
    %v1589 = vpack.c.b16 %v1465, %v1463
    %v1590 = vpack.c.b16 %v1468, %v1466
    %v1591 = vpack.c.b16 %v1469, %v1467
    %v1592 = vpack.c.b16 %v1472, %v1470
    %v1593 = vpack.c.b16 %v1473, %v1471
    %v1594 = vpack.c.b16 %v1476, %v1474
    %v1595 = vpack.c.b16 %v1477, %v1475
    %v1596 = vpack.c.b16 %v1480, %v1478
    %v1597 = vpack.c.b16 %v1481, %v1479
    %v1598 = vpack.c.b16 %v1484, %v1482
    %v1599 = vpack.c.b16 %v1485, %v1483
    %v1600 = vpack.c.b16 %v1488, %v1486
    %v1601 = vpack.c.b16 %v1489, %v1487
    %v1602 = vpack.c.b16 %v1492, %v1490
    %v1603 = vpack.c.b16 %v1493, %v1491
    %v1604 = vpack.c.b16 %v1496, %v1494
    %v1605 = vpack.c.b16 %v1497, %v1495
    %v1606 = vpack.c.b16 %v1500, %v1498
    %v1607 = vpack.c.b16 %v1501, %v1499
    %v1608 = vpack.c.b16 %v1504, %v1502
    %v1609 = vpack.c.b16 %v1505, %v1503
    %v1610 = vpack.c.b16 %v1508, %v1506
    %v1611 = vpack.c.b16 %v1509, %v1507
    %v1612 = vpack.c.b16 %v1512, %v1510
    %v1613 = vpack.c.b16 %v1513, %v1511
    %v1614 = vpack.c.b16 %v1516, %v1514
    %v1615 = vpack.c.b16 %v1517, %v1515
    %v1616 = vpack.c.b16 %v1520, %v1518
    %v1617 = vpack.c.b16 %v1521, %v1519
    %v1618 = vpack.c.b16 %v1524, %v1522
    %v1619 = vpack.c.b16 %v1525, %v1523
    %v1620 = vpack.c.b16 %v1528, %v1526
    %v1621 = vpack.c.b16 %v1529, %v1527
    %v1622 = vpack.c.b16 %v1532, %v1530
    %v1623 = vpack.c.b16 %v1533, %v1531
    %v1624 = vpack.c.b16 %v1536, %v1534
    %v1625 = vpack.c.b16 %v1537, %v1535
    %v1626 = vpack.c.b16 %v1540, %v1538
    %v1627 = vpack.c.b16 %v1541, %v1539
    %v1628 = vpack.c.b16 %v1544, %v1542
    %v1629 = vpack.c.b16 %v1545, %v1543
    %v1630 = vpack.c.b16 %v1548, %v1546
    %v1631 = vpack.c.b16 %v1549, %v1547
    %v1632 = vpack.c.b16 %v1552, %v1550
    %v1633 = vpack.c.b16 %v1553, %v1551
    %v1634 = vpack.c.b16 %v1556, %v1554
    %v1635 = vpack.c.b16 %v1557, %v1555
    %v1636 = vpack.c.b16 %v1560, %v1558
    %v1637 = vpack.c.b16 %v1561, %v1559
    %v1638 = vpack.c.b16 %v1564, %v1562
    %v1639 = vpack.c.b16 %v1565, %v1563
    %v1640 = vpack.c.b16 %v1568, %v1566
    %v1641 = vpack.c.b16 %v1569, %v1567
    %v1642 = vpack.c.b16 %v1572, %v1570
    %v1643 = vpack.c.b16 %v1573, %v1571
    %v1644 = vpack.c.b16 %v1576, %v1574
    %v1645 = vpack.c.b16 %v1577, %v1575
    %v1646 = vpack.c.b16 %v1580, %v1578
    %v1647 = vpack.c.b16 %v1581, %v1579
    %v1648 = vpack.c.b16 %v1584, %v1582
    %v1649 = vpack.c.b16 %v1585, %v1583
    %1714 = vmatprep.subr.bf16.mxu0 %v1587
    %1715 = vmatpush1.bf16.msra.mxu0 %v1586
    %1716 = vmatprep.subr.bf16.mxu0 %v1589
    %1717 = vmatpush1.bf16.msra.mxu0 %v1588
    %1718 = vmatprep.subr.bf16.mxu0 %v1591
    %1719 = vmatpush1.bf16.msra.mxu0 %v1590
    %1720 = vmatprep.subr.bf16.mxu0 %v1593
    %1721 = vmatpush1.bf16.msra.mxu0 %v1592
    %1722 = vmatprep.subr.bf16.mxu0 %v1595
    %1723 = vmatpush1.bf16.msra.mxu0 %v1594
    %1724 = vmatprep.subr.bf16.mxu0 %v1597
    %1725 = vmatpush1.bf16.msra.mxu0 %v1596
    %1726 = vmatprep.subr.bf16.mxu0 %v1599
    %1727 = vmatpush1.bf16.msra.mxu0 %v1598
    %1728 = vmatprep.subr.bf16.mxu0 %v1601
    %1729 = vmatpush1.bf16.msra.mxu0 %v1600
    %1730 = vmatprep.subr.bf16.mxu0 %v1603
    %1731 = vmatpush1.bf16.msra.mxu0 %v1602
    %1732 = vmatprep.subr.bf16.mxu0 %v1605
    %1733 = vmatpush1.bf16.msra.mxu0 %v1604
    %1734 = vmatprep.subr.bf16.mxu0 %v1607
    %1735 = vmatpush1.bf16.msra.mxu0 %v1606
    %1736 = vmatprep.subr.bf16.mxu0 %v1609
    %1737 = vmatpush1.bf16.msra.mxu0 %v1608
    %1738 = vmatprep.subr.bf16.mxu0 %v1611
    %1739 = vmatpush1.bf16.msra.mxu0 %v1610
    %1740 = vmatprep.subr.bf16.mxu0 %v1613
    %1741 = vmatpush1.bf16.msra.mxu0 %v1612
    %1742 = vmatprep.subr.bf16.mxu0 %v1615
    %1743 = vmatpush1.bf16.msra.mxu0 %v1614
    %1744 = vmatprep.subr.bf16.mxu0 %v1617
    %1745 = vmatpush1.bf16.msra.mxu0 %v1616
    %1746 = vmatprep.mubr.bf16.mxu0 %v1315
    %1747 = vmatmul.mubr.bf16.gmra.mrb[0].mxu0 %v1314
    %v1748 = vpop.f32.mrb[0].mxu0
    %v1749 = vadd.f32 %v1387, %v1748
    %v1750 = vpop.f32.mrb[0].mxu0
    %v1751 = vadd.f32 %v1391, %v1750
    %v1752 = vpop.f32.mrb[0].mxu0
    %v1753 = vpop.f32.mrb[0].mxu0
    %1754 = vdwg.mxu0
    %1755 = vmatprep.subr.bf16.mxu0 %v1619
    %1756 = vmatpush1.bf16.msra.mxu0 %v1618
    %1757 = vmatprep.subr.bf16.mxu0 %v1621
    %1758 = vmatpush1.bf16.msra.mxu0 %v1620
    %1759 = vmatprep.subr.bf16.mxu0 %v1623
    %1760 = vmatpush1.bf16.msra.mxu0 %v1622
    %1761 = vmatprep.subr.bf16.mxu0 %v1625
    %1762 = vmatpush1.bf16.msra.mxu0 %v1624
    %1763 = vmatprep.subr.bf16.mxu0 %v1627
    %1764 = vmatpush1.bf16.msra.mxu0 %v1626
    %1765 = vmatprep.subr.bf16.mxu0 %v1629
    %1766 = vmatpush1.bf16.msra.mxu0 %v1628
    %1767 = vmatprep.subr.bf16.mxu0 %v1631
    %1768 = vmatpush1.bf16.msra.mxu0 %v1630
    %1769 = vmatprep.subr.bf16.mxu0 %v1633
    %1770 = vmatpush1.bf16.msra.mxu0 %v1632
    %1771 = vmatprep.subr.bf16.mxu0 %v1635
    %1772 = vmatpush1.bf16.msra.mxu0 %v1634
    %1773 = vmatprep.subr.bf16.mxu0 %v1637
    %1774 = vmatpush1.bf16.msra.mxu0 %v1636
    %1775 = vmatprep.subr.bf16.mxu0 %v1639
    %1776 = vmatpush1.bf16.msra.mxu0 %v1638
    %1777 = vmatprep.subr.bf16.mxu0 %v1641
    %1778 = vmatpush1.bf16.msra.mxu0 %v1640
    %1779 = vmatprep.subr.bf16.mxu0 %v1643
    %1780 = vmatpush1.bf16.msra.mxu0 %v1642
    %1781 = vmatprep.subr.bf16.mxu0 %v1645
    %1782 = vmatpush1.bf16.msra.mxu0 %v1644
    %1783 = vmatprep.subr.bf16.mxu0 %v1647
    %1784 = vmatpush1.bf16.msra.mxu0 %v1646
    %1785 = vmatprep.subr.bf16.mxu0 %v1649
    %1786 = vmatpush1.bf16.msra.mxu0 %v1648
    %1787 = vmatprep.mubr.bf16.mxu0 %v1317
    %1788 = vmatmul.mubr.bf16.gmra.mrb[0].mxu0 %v1316
    %v1789 = vpop.f32.mrb[0].mxu0
    %v1790 = vadd.f32 %v1749, %v1789
    %v1791 = vpop.f32.mrb[0].mxu0
    %v1792 = vadd.f32 %v1751, %v1791
    %v1793 = vpop.f32.mrb[0].mxu0
    %v1794 = vpop.f32.mrb[0].mxu0
    %1795 = vdwg.mxu0
    %v1796 = vld [vmem:[#allocation14] sm:$0x3]
    %v1797 = vld [vmem:[#allocation16] sm:$0x3]
    %v1798 = vadd.f32 %v1790, %v1792
    %1799 = vadd.xlane.f32.xlu0 %v1798
    %v1800 = vpop.xlane.xlu0 %1799
    %v1801 = vrcp.pop 256.0
    %v1802 = vmul.f32 %v1800, %v1801
    %v1803 = vsub.f32 %v1790, %v1802
    %v1804 = vsub.f32 %v1792, %v1802
    %v1805 = vmul.f32 %v1803, %v1803
    %v1806 = vmul.f32 %v1804, %v1804
    %v1807 = vadd.f32 %v1805, %v1806
    %1808 = vadd.xlane.f32.xlu0 %v1807
    %v1809 = vpop.xlane.xlu0 %1808
    %v1810 = vmul.f32 %v1809, %v1801
    %v1811 = vadd.f32 %v1810, 1e-05
    %v1812 = vrsqrt.pop %v1811
    %v1813 = vmul.f32 %v1803, %v1812
    %v1814 = vmul.f32 %v1804, %v1812
    %v1816 = vlaneseq
    %v1817 = vshrl.u32 %v1816, 7
    %v1818 = vsub.s32 0, %v1817
    %v1819 = vrot.slane %v1796, %v1818
    %v1820 = vlaneseq
    %v1821 = vshrl.u32 %v1820, 7
    %v1822 = vsub.s32 1, %v1821
    %v1823 = vrot.slane %v1796, %v1822
    %v1826 = vmul.f32 %v1813, %v1819
    %v1827 = vmul.f32 %v1814, %v1823
    %v1829 = vlaneseq
    %v1830 = vshrl.u32 %v1829, 7
    %v1831 = vsub.s32 0, %v1830
    %v1832 = vrot.slane %v1797, %v1831
    %v1833 = vlaneseq
    %v1834 = vshrl.u32 %v1833, 7
    %v1835 = vsub.s32 1, %v1834
    %v1836 = vrot.slane %v1797, %v1835
    %v1839 = vadd.f32 %v1826, %v1832
    %v1840 = vadd.f32 %v1827, %v1836
    %v1841 = vmax.f32 %v1839, 0.0
    %v1842 = vmax.f32 %v1840, 0.0
    %v1843 = vpack.c.bf16 %v1841, %v1841
    %v1844 = vpack.c.bf16 %v1842, %v1842
    %v1845 = vld [vmem:[%s9] sm:$0xf]
    %v1846 = vld [vmem:[%s9 + $0x4] sm:$0xf]
    %v1847 = vld [vmem:[%s9 + $0x8] sm:$0xf]
    %v1848 = vld [vmem:[%s9 + $0xc] sm:$0xf]
    %v1849 = vld [vmem:[%s9 + $0x10] sm:$0xf]
    %v1850 = vld [vmem:[%s9 + $0x14] sm:$0xf]
    %v1851 = vld [vmem:[%s9 + $0x18] sm:$0xf]
    %v1852 = vld [vmem:[%s9 + $0x1c] sm:$0xf]
    %v1853 = vld [vmem:[%s9 + $0x20] sm:$0xf]
    %v1854 = vld [vmem:[%s9 + $0x24] sm:$0xf]
    %v1855 = vld [vmem:[%s9 + $0x28] sm:$0xf]
    %v1856 = vld [vmem:[%s9 + $0x2c] sm:$0xf]
    %v1857 = vld [vmem:[%s9 + $0x30] sm:$0xf]
    %v1858 = vld [vmem:[%s9 + $0x34] sm:$0xf]
    %v1859 = vld [vmem:[%s9 + $0x38] sm:$0xf]
    %v1860 = vld [vmem:[%s9 + $0x3c] sm:$0xf]
    %v1861 = vld [vmem:[%s9 + $0x40] sm:$0xf]
    %v1862 = vld [vmem:[%s9 + $0x44] sm:$0xf]
    %v1863 = vld [vmem:[%s9 + $0x48] sm:$0xf]
    %v1864 = vld [vmem:[%s9 + $0x4c] sm:$0xf]
    %v1865 = vld [vmem:[%s9 + $0x50] sm:$0xf]
    %v1866 = vld [vmem:[%s9 + $0x54] sm:$0xf]
    %v1867 = vld [vmem:[%s9 + $0x58] sm:$0xf]
    %v1868 = vld [vmem:[%s9 + $0x5c] sm:$0xf]
    %v1869 = vld [vmem:[%s9 + $0x60] sm:$0xf]
    %v1870 = vld [vmem:[%s9 + $0x64] sm:$0xf]
    %v1871 = vld [vmem:[%s9 + $0x68] sm:$0xf]
    %v1872 = vld [vmem:[%s9 + $0x6c] sm:$0xf]
    %v1873 = vld [vmem:[%s9 + $0x70] sm:$0xf]
    %v1874 = vld [vmem:[%s9 + $0x74] sm:$0xf]
    %v1875 = vld [vmem:[%s9 + $0x78] sm:$0xf]
    %v1876 = vld [vmem:[%s9 + $0x7c] sm:$0xf]
    %v1877 = vld [vmem:[#allocation17] sm:$0x1]
    %v1879 = vlaneseq
    %v1880 = vshrl.u32 %v1879, 7
    %v1881 = vsub.s32 0, %v1880
    %v1882 = vrot.slane %v1877, %v1881
    %v1916 = vunpack.c.l.b16 %v1845
    %v1917 = vunpack.c.l.b16 %v1846
    %v1918 = vunpack.c.l.b16 %v1847
    %v1919 = vunpack.c.l.b16 %v1848
    %v1920 = vunpack.c.l.b16 %v1849
    %v1921 = vunpack.c.l.b16 %v1850
    %v1922 = vunpack.c.l.b16 %v1851
    %v1923 = vunpack.c.l.b16 %v1852
    %v1924 = vunpack.c.l.b16 %v1853
    %v1925 = vunpack.c.l.b16 %v1854
    %v1926 = vunpack.c.l.b16 %v1855
    %v1927 = vunpack.c.l.b16 %v1856
    %v1928 = vunpack.c.l.b16 %v1857
    %v1929 = vunpack.c.l.b16 %v1858
    %v1930 = vunpack.c.l.b16 %v1859
    %v1931 = vunpack.c.l.b16 %v1860
    %v1932 = vunpack.c.l.b16 %v1861
    %v1933 = vunpack.c.l.b16 %v1862
    %v1934 = vunpack.c.l.b16 %v1863
    %v1935 = vunpack.c.l.b16 %v1864
    %v1936 = vunpack.c.l.b16 %v1865
    %v1937 = vunpack.c.l.b16 %v1866
    %v1938 = vunpack.c.l.b16 %v1867
    %v1939 = vunpack.c.l.b16 %v1868
    %v1940 = vunpack.c.l.b16 %v1869
    %v1941 = vunpack.c.l.b16 %v1870
    %v1942 = vunpack.c.l.b16 %v1871
    %v1943 = vunpack.c.l.b16 %v1872
    %v1944 = vunpack.c.l.b16 %v1873
    %v1945 = vunpack.c.l.b16 %v1874
    %v1946 = vunpack.c.l.b16 %v1875
    %v1947 = vunpack.c.l.b16 %v1876
    %v1948 = vpack.c.b16 %v1917, %v1916
    %v1949 = vpack.c.b16 %v1919, %v1918
    %v1950 = vpack.c.b16 %v1921, %v1920
    %v1951 = vpack.c.b16 %v1923, %v1922
    %v1952 = vpack.c.b16 %v1925, %v1924
    %v1953 = vpack.c.b16 %v1927, %v1926
    %v1954 = vpack.c.b16 %v1929, %v1928
    %v1955 = vpack.c.b16 %v1931, %v1930
    %v1956 = vpack.c.b16 %v1933, %v1932
    %v1957 = vpack.c.b16 %v1935, %v1934
    %v1958 = vpack.c.b16 %v1937, %v1936
    %v1959 = vpack.c.b16 %v1939, %v1938
    %v1960 = vpack.c.b16 %v1941, %v1940
    %v1961 = vpack.c.b16 %v1943, %v1942
    %v1962 = vpack.c.b16 %v1945, %v1944
    %v1963 = vpack.c.b16 %v1947, %v1946
    %1980 = vmatprep.subr.bf16.mxu0 0
    %1981 = vmatpush1.bf16.msra.mxu0 %v1948
    %1982 = vmatprep.subr.bf16.mxu0 0
    %1983 = vmatpush1.bf16.msra.mxu0 %v1949
    %1984 = vmatprep.subr.bf16.mxu0 0
    %1985 = vmatpush1.bf16.msra.mxu0 %v1950
    %1986 = vmatprep.subr.bf16.mxu0 0
    %1987 = vmatpush1.bf16.msra.mxu0 %v1951
    %1988 = vmatprep.subr.bf16.mxu0 0
    %1989 = vmatpush1.bf16.msra.mxu0 %v1952
    %1990 = vmatprep.subr.bf16.mxu0 0
    %1991 = vmatpush1.bf16.msra.mxu0 %v1953
    %1992 = vmatprep.subr.bf16.mxu0 0
    %1993 = vmatpush1.bf16.msra.mxu0 %v1954
    %1994 = vmatprep.subr.bf16.mxu0 0
    %1995 = vmatpush1.bf16.msra.mxu0 %v1955
    %1996 = vmatprep.subr.bf16.mxu0 0
    %1997 = vmatpush1.bf16.msra.mxu0 %v1956
    %1998 = vmatprep.subr.bf16.mxu0 0
    %1999 = vmatpush1.bf16.msra.mxu0 %v1957
    %2000 = vmatprep.subr.bf16.mxu0 0
    %2001 = vmatpush1.bf16.msra.mxu0 %v1958
    %2002 = vmatprep.subr.bf16.mxu0 0
    %2003 = vmatpush1.bf16.msra.mxu0 %v1959
    %2004 = vmatprep.subr.bf16.mxu0 0
    %2005 = vmatpush1.bf16.msra.mxu0 %v1960
    %2006 = vmatprep.subr.bf16.mxu0 0
    %2007 = vmatpush1.bf16.msra.mxu0 %v1961
    %2008 = vmatprep.subr.bf16.mxu0 0
    %2009 = vmatpush1.bf16.msra.mxu0 %v1962
    %2010 = vmatprep.subr.bf16.mxu0 0
    %2011 = vmatpush1.bf16.msra.mxu0 %v1963
    %2012 = vmatprep.mubr.bf16.mxu0 %v1844
    %2013 = vmatmul.mubr.bf16.gmra.mrb[0].mxu0 %v1843
    %v2014 = vpop.f32.mrb[0].mxu0
    %v2015 = vadd.f32 %v1882, %v2014
    %v2016 = vpop.f32.mrb[0].mxu0
    %v2017 = vpop.f32.mrb[0].mxu0
    %v2018 = vpop.f32.mrb[0].mxu0
    %2019 = vdwg.mxu0
    %v2020 = vld [vmem:[#allocation19] sm:$0x1]
    %v2021 = vld [vmem:[#allocation20] sm:$0x1]
    %2022 = vadd.xlane.f32.xlu0 %v2015
    %v2023 = vpop.xlane.xlu0 %2022
    %v2024 = vrcp.pop 128.0
    %v2025 = vmul.f32 %v2023, %v2024
    %v2026 = vsub.f32 %v2015, %v2025
    %v2027 = vmul.f32 %v2026, %v2026
    %2028 = vadd.xlane.f32.xlu0 %v2027
    %v2029 = vpop.xlane.xlu0 %2028
    %v2030 = vmul.f32 %v2029, %v2024
    %v2031 = vadd.f32 %v2030, 1e-05
    %v2032 = vrsqrt.pop %v2031
    %v2033 = vmul.f32 %v2026, %v2032
    %v2035 = vlaneseq
    %v2036 = vshrl.u32 %v2035, 7
    %v2037 = vsub.s32 0, %v2036
    %v2038 = vrot.slane %v2020, %v2037
    %v2040 = vmul.f32 %v2033, %v2038
    %v2042 = vlaneseq
    %v2043 = vshrl.u32 %v2042, 7
    %v2044 = vsub.s32 0, %v2043
    %v2045 = vrot.slane %v2021, %v2044
    %v2047 = vadd.f32 %v2040, %v2045
    %v2048 = vmax.f32 %v2047, 0.0
    %v2049 = vpack.c.bf16 %v2048, %v2048
    %v2050 = vld [vmem:[%s13] sm:$0xf]
    %v2051 = vld [vmem:[%s13 + $0x4] sm:$0xf]
    %v2052 = vld [vmem:[%s13 + $0x8] sm:$0xf]
    %v2053 = vld [vmem:[%s13 + $0xc] sm:$0xf]
    %v2054 = vld [vmem:[%s13 + $0x10] sm:$0xf]
    %v2055 = vld [vmem:[%s13 + $0x14] sm:$0xf]
    %v2056 = vld [vmem:[%s13 + $0x18] sm:$0xf]
    %v2057 = vld [vmem:[%s13 + $0x1c] sm:$0xf]
    %v2058 = vld [vmem:[%s13 + $0x20] sm:$0xf]
    %v2059 = vld [vmem:[%s13 + $0x24] sm:$0xf]
    %v2060 = vld [vmem:[%s13 + $0x28] sm:$0xf]
    %v2061 = vld [vmem:[%s13 + $0x2c] sm:$0xf]
    %v2062 = vld [vmem:[%s13 + $0x30] sm:$0xf]
    %v2063 = vld [vmem:[%s13 + $0x34] sm:$0xf]
    %v2064 = vld [vmem:[%s13 + $0x38] sm:$0xf]
    %v2065 = vld [vmem:[%s13 + $0x3c] sm:$0xf]
    %v2066 = vld [vmem:[#allocation22] sm:$0x1]
    %v2068 = vlaneseq
    %v2069 = vshrl.u32 %v2068, 7
    %v2070 = vsub.s32 0, %v2069
    %v2071 = vrot.slane %v2066, %v2070
    %v2089 = vunpack.c.l.b16 %v2050
    %v2090 = vunpack.c.l.b16 %v2051
    %v2091 = vunpack.c.l.b16 %v2052
    %v2092 = vunpack.c.l.b16 %v2053
    %v2093 = vunpack.c.l.b16 %v2054
    %v2094 = vunpack.c.l.b16 %v2055
    %v2095 = vunpack.c.l.b16 %v2056
    %v2096 = vunpack.c.l.b16 %v2057
    %v2097 = vunpack.c.l.b16 %v2058
    %v2098 = vunpack.c.l.b16 %v2059
    %v2099 = vunpack.c.l.b16 %v2060
    %v2100 = vunpack.c.l.b16 %v2061
    %v2101 = vunpack.c.l.b16 %v2062
    %v2102 = vunpack.c.l.b16 %v2063
    %v2103 = vunpack.c.l.b16 %v2064
    %v2104 = vunpack.c.l.b16 %v2065
    %v2105 = vpack.c.b16 %v2090, %v2089
    %v2106 = vpack.c.b16 %v2092, %v2091
    %v2107 = vpack.c.b16 %v2094, %v2093
    %v2108 = vpack.c.b16 %v2096, %v2095
    %v2109 = vpack.c.b16 %v2098, %v2097
    %v2110 = vpack.c.b16 %v2100, %v2099
    %v2111 = vpack.c.b16 %v2102, %v2101
    %v2112 = vpack.c.b16 %v2104, %v2103
    %2121 = vmatprep.subr.bf16.mxu0 0
    %2122 = vmatpush1.bf16.msra.mxu0 %v2105
    %2123 = vmatprep.subr.bf16.mxu0 0
    %2124 = vmatpush1.bf16.msra.mxu0 %v2106
    %2125 = vmatprep.subr.bf16.mxu0 0
    %2126 = vmatpush1.bf16.msra.mxu0 %v2107
    %2127 = vmatprep.subr.bf16.mxu0 0
    %2128 = vmatpush1.bf16.msra.mxu0 %v2108
    %2129 = vmatprep.subr.bf16.mxu0 0
    %2130 = vmatpush1.bf16.msra.mxu0 %v2109
    %2131 = vmatprep.subr.bf16.mxu0 0
    %2132 = vmatpush1.bf16.msra.mxu0 %v2110
    %2133 = vmatprep.subr.bf16.mxu0 0
    %2134 = vmatpush1.bf16.msra.mxu0 %v2111
    %2135 = vmatprep.subr.bf16.mxu0 0
    %2136 = vmatpush1.bf16.msra.mxu0 %v2112
    %2137 = vmatprep.subr.bf16.mxu0 0
    %2138 = vmatpush1.bf16.msra.mxu0 0
    %2139 = vmatprep.subr.bf16.mxu0 0
    %2140 = vmatpush1.bf16.msra.mxu0 0
    %2141 = vmatprep.subr.bf16.mxu0 0
    %2142 = vmatpush1.bf16.msra.mxu0 0
    %2143 = vmatprep.subr.bf16.mxu0 0
    %2144 = vmatpush1.bf16.msra.mxu0 0
    %2145 = vmatprep.subr.bf16.mxu0 0
    %2146 = vmatpush1.bf16.msra.mxu0 0
    %2147 = vmatprep.subr.bf16.mxu0 0
    %2148 = vmatpush1.bf16.msra.mxu0 0
    %2149 = vmatprep.subr.bf16.mxu0 0
    %2150 = vmatpush1.bf16.msra.mxu0 0
    %2151 = vmatprep.subr.bf16.mxu0 0
    %2152 = vmatpush1.bf16.msra.mxu0 0
    %2153 = vmatprep.mubr.bf16.mxu0 0
    %2154 = vmatmul.mubr.bf16.gmra.mrb[0].mxu0 %v2049
    %v2155 = vpop.f32.mrb[0].mxu0
    %v2156 = vadd.f32 %v2071, %v2155
    %v2157 = vpop.f32.mrb[0].mxu0
    %v2158 = vpop.f32.mrb[0].mxu0
    %v2159 = vpop.f32.mrb[0].mxu0
    %2160 = vdwg.mxu0
    %v2161 = vld [vmem:[#allocation23] sm:$0x1]
    %v2162 = vld [vmem:[#allocation25] sm:$0x1]
    %vm2163 = vcmask 523264
    %v2164 = vsel %vm2163, %v2156, 0.0
    %2165 = vadd.xlane.f32.xlu0 %v2164
    %v2166 = vpop.xlane.xlu0 %2165
    %v2167 = vrcp.pop 64.0
    %v2168 = vmul.f32 %v2166, %v2167
    %v2169 = vsub.f32 %v2156, %v2168
    %v2170 = vmul.f32 %v2169, %v2169
    %v2171 = vsel %vm2163, %v2170, 0.0
    %2172 = vadd.xlane.f32.xlu0 %v2171
    %v2173 = vpop.xlane.xlu0 %2172
    %v2174 = vmul.f32 %v2173, %v2167
    %v2175 = vadd.f32 %v2174, 1e-05
    %v2176 = vrsqrt.pop %v2175
    %v2177 = vmul.f32 %v2169, %v2176
    %v2179 = vlaneseq
    %v2180 = vshrl.u32 %v2179, 7
    %v2181 = vsub.s32 0, %v2180
    %v2182 = vrot.slane %v2161, %v2181
    %v2184 = vmul.f32 %v2177, %v2182
    %v2186 = vlaneseq
    %v2187 = vshrl.u32 %v2186, 7
    %v2188 = vsub.s32 0, %v2187
    %v2189 = vrot.slane %v2162, %v2188
    %v2191 = vadd.f32 %v2184, %v2189
    %v2192 = vmax.f32 %v2191, 0.0
    %v2193 = vpack.c.bf16 %v2192, %v2192
    %v2194 = vld [vmem:[%s17] sm:$0xf]
    %v2195 = vld [vmem:[%s17 + $0x4] sm:$0xf]
    %v2196 = vld [vmem:[%s17 + $0x8] sm:$0xf]
    %v2197 = vld [vmem:[%s17 + $0xc] sm:$0xf]
    %v2198 = vld [vmem:[%s17 + $0x10] sm:$0xf]
    %v2199 = vld [vmem:[%s17 + $0x14] sm:$0xf]
    %v2200 = vld [vmem:[%s17 + $0x18] sm:$0xf]
    %v2201 = vld [vmem:[%s17 + $0x1c] sm:$0xf]
    %v2202 = vld [vmem:[%s18] sm:$0x1]
    %v2204 = vlaneseq
    %v2205 = vshrl.u32 %v2204, 7
    %v2206 = vsub.s32 0, %v2205
    %v2207 = vrot.slane %v2202, %v2206
    %v2217 = vunpack.c.l.b16 %v2194
    %v2218 = vunpack.c.l.b16 %v2195
    %v2219 = vunpack.c.l.b16 %v2196
    %v2220 = vunpack.c.l.b16 %v2197
    %v2221 = vunpack.c.l.b16 %v2198
    %v2222 = vunpack.c.l.b16 %v2199
    %v2223 = vunpack.c.l.b16 %v2200
    %v2224 = vunpack.c.l.b16 %v2201
    %v2225 = vpack.c.b16 %v2218, %v2217
    %v2226 = vpack.c.b16 %v2220, %v2219
    %v2227 = vpack.c.b16 %v2222, %v2221
    %v2228 = vpack.c.b16 %v2224, %v2223
    %v2234 = vsel %vm2163, %v2193, 0
    %2236 = vmatprep.subr.bf16.mxu0 0
    %2237 = vmatpush1.bf16.msra.mxu0 %v2225
    %2238 = vmatprep.subr.bf16.mxu0 0
    %2239 = vmatpush1.bf16.msra.mxu0 %v2226
    %2240 = vmatprep.subr.bf16.mxu0 0
    %2241 = vmatpush1.bf16.msra.mxu0 %v2227
    %2242 = vmatprep.subr.bf16.mxu0 0
    %2243 = vmatpush1.bf16.msra.mxu0 %v2228
    %2244 = vmatprep.subr.bf16.mxu0 0
    %2245 = vmatpush1.bf16.msra.mxu0 0
    %2246 = vmatprep.subr.bf16.mxu0 0
    %2247 = vmatpush1.bf16.msra.mxu0 0
    %2248 = vmatprep.subr.bf16.mxu0 0
    %2249 = vmatpush1.bf16.msra.mxu0 0
    %2250 = vmatprep.subr.bf16.mxu0 0
    %2251 = vmatpush1.bf16.msra.mxu0 0
    %2252 = vmatprep.subr.bf16.mxu0 0
    %2253 = vmatpush1.bf16.msra.mxu0 0
    %2254 = vmatprep.subr.bf16.mxu0 0
    %2255 = vmatpush1.bf16.msra.mxu0 0
    %2256 = vmatprep.subr.bf16.mxu0 0
    %2257 = vmatpush1.bf16.msra.mxu0 0
    %2258 = vmatprep.subr.bf16.mxu0 0
    %2259 = vmatpush1.bf16.msra.mxu0 0
    %2260 = vmatprep.subr.bf16.mxu0 0
    %2261 = vmatpush1.bf16.msra.mxu0 0
    %2262 = vmatprep.subr.bf16.mxu0 0
    %2263 = vmatpush1.bf16.msra.mxu0 0
    %2264 = vmatprep.subr.bf16.mxu0 0
    %2265 = vmatpush1.bf16.msra.mxu0 0
    %2266 = vmatprep.subr.bf16.mxu0 0
    %2267 = vmatpush1.bf16.msra.mxu0 0
    %2268 = vmatprep.mubr.bf16.mxu0 0
    %2269 = vmatmul.mubr.bf16.gmra.mrb[0].mxu0 %v2234
    %v2270 = vpop.f32.mrb[0].mxu0
    %v2271 = vadd.f32 %v2207, %v2270
    %v2272 = vpop.f32.mrb[0].mxu0
    %v2273 = vpop.f32.mrb[0].mxu0
    %v2274 = vpop.f32.mrb[0].mxu0
    %2275 = vdwg.mxu0
    %vm2276 = vcmp.lt.s32.totalorder %v1212, 5
    %v2277 = vsel %vm2276, 1, 0
    %vm2278 = vcmp.eq.s32.totalorder %v2277, 1
    %v2279 = vsel %vm2278, %v2271, -1e+30
    %2280 = vmax.xlane.f32.xlu0 %v2279
    %v2281 = vpop.xlane.xlu0 %2280
    %v2282 = vsub.f32 %v2279, %v2281
    %v2283 = vmul.f32 %v2282, 1.442695
    %v2284 = vpow.pop %v2283
    %2285 = vadd.xlane.f32.xlu0 %v2284
    %v2286 = vpop.xlane.xlu0 %2285
    %v2287 = vrcp.pop %v2286
    %v2288 = vmul.f32 %v2284, %v2287
    %2289 = vst [vmem:[#allocation26] sm:$0xff] %v2288
    // Predicated region
    $region138: #{tpu_custom_call.1} parent=1 // pred_check
      _
    $region139: #{tpu_custom_call.1} parent=1 // pred_check_branch
      %2291 = sbr.rel (0) target = $region141
    $region140: #{tpu_custom_call.1} parent=1 // pred_region
      %s2293 = ssub.s32 128, 128
      %2294 = vsyncadd [#allocation4], %s2293
      %s2296 = sshll.u32 [#allocation26], 4
      %s2297 = int_to_ptr.vmem [resolvable:$true] %s2296
      %2299 = dma.vmem_to_hbm [thread:$0]  %s2297, 128, %s19, [#allocation4]
    $region141: #{tpu_custom_call.1} parent=1 // pred_fallthru
      _
    // Predicated region
    $region142: #{tpu_custom_call.1} parent=1 // pred_check
      _
    $region143: #{tpu_custom_call.1} parent=1 // pred_check_branch
      %2301 = sbr.rel (0) target = $region145
    $region144: #{tpu_custom_call.1} parent=1 // pred_region
      %2302 = dma.done [#allocation4], 128
    $region145: #{tpu_custom_call.1} parent=1 // pred_fallthru
      _
    %2303 = vsyncpa [#allocation3], 1
    %2304 = vsyncpa [#allocation6], 1
    %2305 = vsyncpa [#allocation9], 1
    %2306 = vsyncpa [#allocation12], 1
    %2307 = vsyncpa [#allocation15], 1
    %2308 = vsyncpa [#allocation18], 1
    %2309 = vsyncpa [#allocation21], 1
    %2310 = vsyncpa [#allocation24], 1
    %2311 = vsyncpa [#allocation4], 1

</llo_original>
